<compile_context>
chip_gen: v6e
topology: v6e:2x2x1
jax: 0.10.0
libtpu: 0.0.40
codegen_flags: <defaults>
</compile_context>

<pallas_src>
import functools

import jax
import jax.numpy as jnp
from jax import lax
from jax.experimental import pallas as pl
from jax.experimental.pallas import tpu as pltpu

_VMEM_LIMIT = 48 * 1024 * 1024  # safe on v5e/v6e (128 MiB) and v7x (64 MiB/TC)


def _pick_tile(dim, candidates):
    """Largest candidate tile evenly dividing `dim`, else the full dim.

    Fallback-to-full keeps the (8,128) block constraint satisfied for small
    demo shapes; realistic shapes should be 128-multiples.
    """
    for c in candidates:
        if dim % c == 0:
            return c
    return dim


# ---------------------------------------------------------------------------
# Fused qkv linear: q/k/v = x @ Wq/Wk/Wv + bq/bk/bv
# grid = (M/tm, D/tn, K/tk); x is read once, three bf16 matmuls per step,
# three f32 accumulators, three contiguous [M, D] bf16 outputs.
# ---------------------------------------------------------------------------
def _qkv_kernel(x_ref, wq_ref, wk_ref, wv_ref, bq_ref, bk_ref, bv_ref,
                q_ref, k_ref, v_ref, accq, acck, accv):
    ks = pl.program_id(2)

    @pl.when(ks == 0)
    def _init():
        accq[...] = jnp.zeros(accq.shape, jnp.float32)
        acck[...] = jnp.zeros(acck.shape, jnp.float32)
        accv[...] = jnp.zeros(accv.shape, jnp.float32)

    x = x_ref[...].astype(jnp.bfloat16)  # bf16 MXU operands, f32 accumulation
    accq[...] += jnp.dot(x, wq_ref[...], preferred_element_type=jnp.float32)
    acck[...] += jnp.dot(x, wk_ref[...], preferred_element_type=jnp.float32)
    accv[...] += jnp.dot(x, wv_ref[...], preferred_element_type=jnp.float32)

    @pl.when(ks == pl.num_programs(2) - 1)
    def _finalize():
        q_ref[...] = (accq[...] + bq_ref[...]).astype(q_ref.dtype)
        k_ref[...] = (acck[...] + bk_ref[...]).astype(k_ref.dtype)
        v_ref[...] = (accv[...] + bv_ref[...]).astype(v_ref.dtype)


def _qkv_linear(x2d, wq, wk, wv, bq, bk, bv):
    """x2d: [M, K]; wq/wk/wv: [K, D]; bq/bk/bv: [1, D] -> (q, k, v) each [M, D] bf16."""
    M, K = x2d.shape
    N = wq.shape[1]
    tm = _pick_tile(M, (256, 128, 64, 32, 16, 8))
    tn = _pick_tile(N, (256, 128))
    tk = _pick_tile(K, (512, 256, 128))
    grid = (M // tm, N // tn, K // tk)

    w_spec = pl.BlockSpec((tk, tn), lambda i, j, k: (k, j))
    b_spec = pl.BlockSpec((1, tn), lambda i, j, k: (0, j))
    o_spec = pl.BlockSpec((tm, tn), lambda i, j, k: (i, j))

    return pl.pallas_call(
        _qkv_kernel,
        out_shape=(jax.ShapeDtypeStruct((M, N), jnp.bfloat16),
                   jax.ShapeDtypeStruct((M, N), jnp.bfloat16),
                   jax.ShapeDtypeStruct((M, N), jnp.bfloat16)),
        grid=grid,
        in_specs=[
            pl.BlockSpec((tm, tk), lambda i, j, k: (i, k)),
            w_spec, w_spec, w_spec,
            b_spec, b_spec, b_spec,
        ],
        out_specs=(o_spec, o_spec, o_spec),
        scratch_shapes=[
            pltpu.VMEM((tm, tn), jnp.float32),
            pltpu.VMEM((tm, tn), jnp.float32),
            pltpu.VMEM((tm, tn), jnp.float32),
        ],
        compiler_params=pltpu.CompilerParams(
            dimension_semantics=("parallel", "parallel", "arbitrary"),
            vmem_limit_bytes=_VMEM_LIMIT,
        ),
        cost_estimate=pl.CostEstimate(
            flops=3 * 2 * M * N * K,
            transcendentals=0,
            bytes_accessed=4 * M * K + 2 * 3 * (K * N + M * N) + 4 * 3 * N,
        ),
    )(x2d, wq, wk, wv, bq, bk, bv)


# ---------------------------------------------------------------------------
# Flash attention over contiguous q/k/v [B, S, D] (D = H*Hd, head-major lanes).
# grid = (B, Sq/tq, Skv/tk); kv axis is the trailing "arbitrary" reduction.
# Online softmax with per-head m/l/acc scratch; lane-dense [B, S, D] output.
# ---------------------------------------------------------------------------
def _flash_attn_kernel(q_ref, k_ref, v_ref, o_ref, m_ref, l_ref, acc_ref,
                       *, num_heads, head_dim):
    ki = pl.program_id(2)

    @pl.when(ki == 0)
    def _init():
        m_ref[...] = jnp.full(m_ref.shape, -jnp.inf, jnp.float32)
        l_ref[...] = jnp.zeros(l_ref.shape, jnp.float32)
        acc_ref[...] = jnp.zeros(acc_ref.shape, jnp.float32)

    # Static unroll over heads (static lane slices keep everything MXU/VPU
    # friendly).  For very large num_heads consider lax.fori_loop / grid-H to
    # bound vreg live ranges.
    for h in range(num_heads):
        sl = slice(h * head_dim, (h + 1) * head_dim)
        q = q_ref[0, :, sl]          # (tq, Hd) bf16, 1/sqrt(Hd) pre-folded into Wq
        k = k_ref[0, :, sl]          # (tk, Hd) bf16
        v = v_ref[0, :, sl]          # (tk, Hd) bf16

        # Contract head_dim directly (no k.T materialization).
        s = lax.dot_general(q, k, (((1,), (1,)), ((), ())),
                            preferred_element_type=jnp.float32)    # (tq, tk) f32

        m_prev = m_ref[:, h:h + 1]                                  # (tq, 1)
        m_new = jnp.maximum(m_prev, jnp.max(s, axis=-1, keepdims=True))
        alpha = jnp.exp(m_prev - m_new)
        p = jnp.exp(s - m_new)                                      # unnormalized
        l_ref[:, h:h + 1] = alpha * l_ref[:, h:h + 1] + jnp.sum(p, axis=-1,
                                                                keepdims=True)
        acc_ref[h] = alpha * acc_ref[h] + jnp.dot(
            p.astype(jnp.bfloat16), v, preferred_element_type=jnp.float32)
        m_ref[:, h:h + 1] = m_new

    @pl.when(ki == pl.num_programs(2) - 1)
    def _finalize():
        # Assemble the per-head accumulators into one lane-dense (tq, D) slab.
        for h in range(num_heads):
            sl = slice(h * head_dim, (h + 1) * head_dim)
            inv_l = pl.reciprocal(l_ref[:, h:h + 1], approx=False)  # exact, EUP
            o_ref[0, :, sl] = (acc_ref[h] * inv_l).astype(o_ref.dtype)


def _flash_attention(q, k, v, num_heads):
    """q/k/v: [B, S, D] bf16 -> attention output [B, S, D] bf16."""
    B, S, D = q.shape
    head_dim = D // num_heads
    tq = _pick_tile(S, (256, 128))
    tk = _pick_tile(S, (256, 128))
    grid = (B, S // tq, S // tk)

    kernel = functools.partial(_flash_attn_kernel,
                               num_heads=num_heads, head_dim=head_dim)
    kv_reads = 2 * B * (S // tq) * S * D          # K and V re-read per q tile
    return pl.pallas_call(
        kernel,
        out_shape=jax.ShapeDtypeStruct((B, S, D), q.dtype),
        grid=grid,
        in_specs=[
            pl.BlockSpec((1, tq, D), lambda b, qi, ki: (b, qi, 0)),
            pl.BlockSpec((1, tk, D), lambda b, qi, ki: (b, ki, 0)),
            pl.BlockSpec((1, tk, D), lambda b, qi, ki: (b, ki, 0)),
        ],
        out_specs=pl.BlockSpec((1, tq, D), lambda b, qi, ki: (b, qi, 0)),
        scratch_shapes=[
            pltpu.VMEM((tq, num_heads), jnp.float32),            # running max m
            pltpu.VMEM((tq, num_heads), jnp.float32),            # running sum l
            pltpu.VMEM((num_heads, tq, head_dim), jnp.float32),  # output acc
        ],
        compiler_params=pltpu.CompilerParams(
            dimension_semantics=("parallel", "parallel", "arbitrary"),
            vmem_limit_bytes=_VMEM_LIMIT,
        ),
        cost_estimate=pl.CostEstimate(
            flops=4 * B * S * S * D,
            transcendentals=B * num_heads * S * S,
            bytes_accessed=2 * (B * S * D + kv_reads + B * S * D),
        ),
    )(q, k, v)


# ---------------------------------------------------------------------------
# Output projection: standard tiled [M, D] x [D, D] matmul (full-D contraction)
# ---------------------------------------------------------------------------
def _proj_kernel(x_ref, w_ref, b_ref, o_ref, acc_ref):
    ks = pl.program_id(2)

    @pl.when(ks == 0)
    def _init():
        acc_ref[...] = jnp.zeros(acc_ref.shape, jnp.float32)

    acc_ref[...] += jnp.dot(x_ref[...], w_ref[...],
                            preferred_element_type=jnp.float32)

    @pl.when(ks == pl.num_programs(2) - 1)
    def _finalize():
        o_ref[...] = (acc_ref[...] + b_ref[...]).astype(o_ref.dtype)


def _proj(x2d, w, b, out_dtype):
    """x2d: [M, D] bf16; w: [D, N] bf16; b: [1, N] f32 -> [M, N] out_dtype."""
    M, K = x2d.shape
    N = w.shape[1]
    tm = _pick_tile(M, (256, 128, 64, 32, 16, 8))
    tn = _pick_tile(N, (256, 128))
    tk = _pick_tile(K, (512, 256, 128))
    grid = (M // tm, N // tn, K // tk)
    return pl.pallas_call(
        _proj_kernel,
        out_shape=jax.ShapeDtypeStruct((M, N), out_dtype),
        grid=grid,
        in_specs=[
            pl.BlockSpec((tm, tk), lambda i, j, k: (i, k)),
            pl.BlockSpec((tk, tn), lambda i, j, k: (k, j)),
            pl.BlockSpec((1, tn), lambda i, j, k: (0, j)),
        ],
        out_specs=pl.BlockSpec((tm, tn), lambda i, j, k: (i, j)),
        scratch_shapes=[pltpu.VMEM((tm, tn), jnp.float32)],
        compiler_params=pltpu.CompilerParams(
            dimension_semantics=("parallel", "parallel", "arbitrary"),
            vmem_limit_bytes=_VMEM_LIMIT,
        ),
        cost_estimate=pl.CostEstimate(
            flops=2 * M * N * K,
            transcendentals=0,
            bytes_accessed=2 * (M * K + K * N) + 4 * (M * N + N),
        ),
    )(x2d, w, b)


# ---------------------------------------------------------------------------
# Parameters + module wrapper (only free reshapes in plain JAX)
# ---------------------------------------------------------------------------
def init_params(key, dim, num_heads):
    """Synthetic params mirroring DotProductAttention.__init__.

    qkv weight/bias stored pre-split as wq/wk/wv (in_dim, out_dim layout), bf16;
    the SDPA 1/sqrt(head_dim) scale is folded into wq / bq.  Biases stay f32.
    """
    head_dim = dim // num_heads
    sm_scale = 1.0 / float(head_dim) ** 0.5
    init_scale = 1.0 / float(dim) ** 0.5
    k1, k2, k3, k4 = jax.random.split(key, 4)
    w_qkv = jax.random.normal(k1, (dim, 3 * dim), jnp.float32) * init_scale
    b_qkv = jax.random.normal(k2, (1, 3 * dim), jnp.float32) * 0.01
    return {
        "wq": (w_qkv[:, 0 * dim:1 * dim] * sm_scale).astype(jnp.bfloat16),
        "wk": w_qkv[:, 1 * dim:2 * dim].astype(jnp.bfloat16),
        "wv": w_qkv[:, 2 * dim:3 * dim].astype(jnp.bfloat16),
        "bq": b_qkv[:, 0 * dim:1 * dim] * sm_scale,
        "bk": b_qkv[:, 1 * dim:2 * dim],
        "bv": b_qkv[:, 2 * dim:3 * dim],
        "proj_w": (jax.random.normal(k3, (dim, dim), jnp.float32)
                   * init_scale).astype(jnp.bfloat16),
        "proj_b": jax.random.normal(k4, (1, dim), jnp.float32) * 0.01,
    }


def dot_product_attention(x, params, num_heads):
    """Forward pass matching the PyTorch module. x: [B, S, D] -> [B, S, D]."""
    B, S, D = x.shape
    assert D % num_heads == 0
    M = B * S

    # Fused qkv linear -> three contiguous [M, D] bf16 tensors.
    q2, k2, v2 = _qkv_linear(x.reshape(M, D),
                             params["wq"], params["wk"], params["wv"],
                             params["bq"], params["bk"], params["bv"])

    # Flash attention on contiguous [B, S, D] slabs -> lane-dense [B, S, D].
    o = _flash_attention(q2.reshape(B, S, D), k2.reshape(B, S, D),
                         v2.reshape(B, S, D), num_heads)

    # Standard full-D-contraction output projection.
    out = _proj(o.reshape(M, D), params["proj_w"], params["proj_b"], x.dtype)
    return out.reshape(B, S, D)


def _reference(x, params, num_heads):
    """Pure-JAX f32 reference (same bf16-quantized weights)."""
    B, S, D = x.shape
    Hd = D // num_heads
    f32 = jnp.float32
    q = x @ params["wq"].astype(f32) + params["bq"]
    k = x @ params["wk"].astype(f32) + params["bk"]
    v = x @ params["wv"].astype(f32) + params["bv"]

    def split(t):
        return t.reshape(B, S, num_heads, Hd).transpose(0, 2, 1, 3)

    qh, kh, vh = split(q), split(k), split(v)   # scale already folded into wq
    s = jnp.einsum("bhqd,bhkd->bhqk", qh, kh)
    p = jax.nn.softmax(s, axis=-1)
    o = jnp.einsum("bhqk,bhkd->bhqd", p, vh)
    o = o.transpose(0, 2, 1, 3).reshape(B, S, D)
    return o @ params["proj_w"].astype(f32) + params["proj_b"]


if __name__ == "__main__":
    batch, seqlen, dim, num_heads = 2, 8, 32, 4

    key = jax.random.PRNGKey(0)
    kx, kp = jax.random.split(key)
    x = jax.random.normal(kx, (batch, seqlen, dim), jnp.float32)
    params = init_params(kp, dim, num_heads)

    fwd = jax.jit(functools.partial(dot_product_attention, num_heads=num_heads))
    out = fwd(x, params)
    jax.block_until_ready(out)

    assert out.shape == (batch, seqlen, dim)
    assert bool(jnp.all(jnp.isfinite(out)))
    ref = _reference(x, params, num_heads)
    max_err = float(jnp.max(jnp.abs(out - ref)))
    assert max_err < 5e-2, f"max abs error vs reference: {max_err}"
    print("KERNEL_OK")
</pallas_src>

<mosaic_0001>
module attributes {stable_mosaic.version = 11 : i64} {
  func.func @_qkv_kernel(%arg0: i32, %arg1: i32, %arg2: i32, %arg3: memref<16x32xf32, #tpu.memory_space<vmem>>, %arg4: memref<32x32xbf16, #tpu.memory_space<vmem>>, %arg5: memref<32x32xbf16, #tpu.memory_space<vmem>>, %arg6: memref<32x32xbf16, #tpu.memory_space<vmem>>, %arg7: memref<1x32xf32, #tpu.memory_space<vmem>>, %arg8: memref<1x32xf32, #tpu.memory_space<vmem>>, %arg9: memref<1x32xf32, #tpu.memory_space<vmem>>, %arg10: memref<16x32xbf16, #tpu.memory_space<vmem>>, %arg11: memref<16x32xbf16, #tpu.memory_space<vmem>>, %arg12: memref<16x32xbf16, #tpu.memory_space<vmem>>, %arg13: memref<16x32xf32, #tpu.memory_space<vmem>>, %arg14: memref<16x32xf32, #tpu.memory_space<vmem>>, %arg15: memref<16x32xf32, #tpu.memory_space<vmem>>) attributes {dimension_semantics = [#tpu.dimension_semantics<parallel>, #tpu.dimension_semantics<parallel>, #tpu.dimension_semantics<arbitrary>], iteration_bounds = array<i64: 1, 1, 1>, scalar_prefetch = 0 : i64, scratch_operands = 3 : i64, tpu.core_type = #tpu.core_type<tc>, window_params = [{transform_indices = @transform_0, window_bounds = array<i64: 16, 32>}, {transform_indices = @transform_1, window_bounds = array<i64: 32, 32>}, {transform_indices = @transform_2, window_bounds = array<i64: 32, 32>}, {transform_indices = @transform_3, window_bounds = array<i64: 32, 32>}, {transform_indices = @transform_4, window_bounds = array<i64: 1, 32>}, {transform_indices = @transform_5, window_bounds = array<i64: 1, 32>}, {transform_indices = @transform_6, window_bounds = array<i64: 1, 32>}, {transform_indices = @transform_7, window_bounds = array<i64: 16, 32>}, {transform_indices = @transform_8, window_bounds = array<i64: 16, 32>}, {transform_indices = @transform_9, window_bounds = array<i64: 16, 32>}]} {
    %c0_i32 = arith.constant 0 : i32
    %0 = arith.cmpi eq, %arg2, %c0_i32 : i32
    %1 = arith.extui %0 : i1 to i32
    %c0_i32_0 = arith.constant 0 : i32
    %2 = arith.cmpi ne, %1, %c0_i32_0 : i32
    scf.if %2 {
      %cst_24 = arith.constant 0.000000e+00 : f32
      %23 = vector.broadcast %cst_24 : f32 to vector<16x32xf32>
      %c0_25 = arith.constant 0 : index
      %c0_26 = arith.constant 0 : index
      %24 = vector.load %arg13[%c0_25, %c0_26] : memref<16x32xf32, #tpu.memory_space<vmem>>, vector<16x32xf32>
      tpu.vector_store %arg13[%c0_25, %c0_26], %23 {strides = array<i32>} : memref<16x32xf32, #tpu.memory_space<vmem>>, vector<16x32xf32>,
      %cst_27 = arith.constant 0.000000e+00 : f32
      %25 = vector.broadcast %cst_27 : f32 to vector<16x32xf32>
      %c0_28 = arith.constant 0 : index
      %c0_29 = arith.constant 0 : index
      %26 = vector.load %arg14[%c0_28, %c0_29] : memref<16x32xf32, #tpu.memory_space<vmem>>, vector<16x32xf32>
      tpu.vector_store %arg14[%c0_28, %c0_29], %25 {strides = array<i32>} : memref<16x32xf32, #tpu.memory_space<vmem>>, vector<16x32xf32>,
      %cst_30 = arith.constant 0.000000e+00 : f32
      %27 = vector.broadcast %cst_30 : f32 to vector<16x32xf32>
      %c0_31 = arith.constant 0 : index
      %c0_32 = arith.constant 0 : index
      %28 = vector.load %arg15[%c0_31, %c0_32] : memref<16x32xf32, #tpu.memory_space<vmem>>, vector<16x32xf32>
      tpu.vector_store %arg15[%c0_31, %c0_32], %27 {strides = array<i32>} : memref<16x32xf32, #tpu.memory_space<vmem>>, vector<16x32xf32>,
    } else {
    }
    %c0 = arith.constant 0 : index
    %c0_1 = arith.constant 0 : index
    %3 = vector.load %arg3[%c0, %c0_1] : memref<16x32xf32, #tpu.memory_space<vmem>>, vector<16x32xf32>
    %4 = arith.truncf %3 : vector<16x32xf32> to vector<16x32xbf16>
    %c0_2 = arith.constant 0 : index
    %c0_3 = arith.constant 0 : index
    %5 = vector.load %arg13[%c0_2, %c0_3] : memref<16x32xf32, #tpu.memory_space<vmem>>, vector<16x32xf32>
    %c0_4 = arith.constant 0 : index
    %c0_5 = arith.constant 0 : index
    %6 = vector.load %arg4[%c0_4, %c0_5] : memref<32x32xbf16, #tpu.memory_space<vmem>>, vector<32x32xbf16>
    %cst = arith.constant dense<0.000000e+00> : vector<16x32xf32>
    %7 = tpu.matmul %4, %6, %cst {dimension_numbers = #tpu.dot_dimension_numbers<[1], [0], [0], [1], [0, 0, 1, 1], [], []>} : vector<16x32xbf16>, vector<32x32xbf16>, vector<16x32xf32> -> vector<16x32xf32>
    %8 = arith.addf %5, %7 : vector<16x32xf32>
    %c0_6 = arith.constant 0 : index
    %c0_7 = arith.constant 0 : index
    %9 = vector.load %arg13[%c0_6, %c0_7] : memref<16x32xf32, #tpu.memory_space<vmem>>, vector<16x32xf32>
    tpu.vector_store %arg13[%c0_6, %c0_7], %8 {strides = array<i32>} : memref<16x32xf32, #tpu.memory_space<vmem>>, vector<16x32xf32>,
    %c0_8 = arith.constant 0 : index
    %c0_9 = arith.constant 0 : index
    %10 = vector.load %arg14[%c0_8, %c0_9] : memref<16x32xf32, #tpu.memory_space<vmem>>, vector<16x32xf32>
    %c0_10 = arith.constant 0 : index
    %c0_11 = arith.constant 0 : index
    %11 = vector.load %arg5[%c0_10, %c0_11] : memref<32x32xbf16, #tpu.memory_space<vmem>>, vector<32x32xbf16>
    %cst_12 = arith.constant dense<0.000000e+00> : vector<16x32xf32>
    %12 = tpu.matmul %4, %11, %cst_12 {dimension_numbers = #tpu.dot_dimension_numbers<[1], [0], [0], [1], [0, 0, 1, 1], [], []>} : vector<16x32xbf16>, vector<32x32xbf16>, vector<16x32xf32> -> vector<16x32xf32>
    %13 = arith.addf %10, %12 : vector<16x32xf32>
    %c0_13 = arith.constant 0 : index
    %c0_14 = arith.constant 0 : index
    %14 = vector.load %arg14[%c0_13, %c0_14] : memref<16x32xf32, #tpu.memory_space<vmem>>, vector<16x32xf32>
    tpu.vector_store %arg14[%c0_13, %c0_14], %13 {strides = array<i32>} : memref<16x32xf32, #tpu.memory_space<vmem>>, vector<16x32xf32>,
    %c0_15 = arith.constant 0 : index
    %c0_16 = arith.constant 0 : index
    %15 = vector.load %arg15[%c0_15, %c0_16] : memref<16x32xf32, #tpu.memory_space<vmem>>, vector<16x32xf32>
    %c0_17 = arith.constant 0 : index
    %c0_18 = arith.constant 0 : index
    %16 = vector.load %arg6[%c0_17, %c0_18] : memref<32x32xbf16, #tpu.memory_space<vmem>>, vector<32x32xbf16>
    %cst_19 = arith.constant dense<0.000000e+00> : vector<16x32xf32>
    %17 = tpu.matmul %4, %16, %cst_19 {dimension_numbers = #tpu.dot_dimension_numbers<[1], [0], [0], [1], [0, 0, 1, 1], [], []>} : vector<16x32xbf16>, vector<32x32xbf16>, vector<16x32xf32> -> vector<16x32xf32>
    %18 = arith.addf %15, %17 : vector<16x32xf32>
    %c0_20 = arith.constant 0 : index
    %c0_21 = arith.constant 0 : index
    %19 = vector.load %arg15[%c0_20, %c0_21] : memref<16x32xf32, #tpu.memory_space<vmem>>, vector<16x32xf32>
    tpu.vector_store %arg15[%c0_20, %c0_21], %18 {strides = array<i32>} : memref<16x32xf32, #tpu.memory_space<vmem>>, vector<16x32xf32>,
    %c0_i32_22 = arith.constant 0 : i32
    %20 = arith.cmpi eq, %arg2, %c0_i32_22 : i32
    %21 = arith.extui %20 : i1 to i32
    %c0_i32_23 = arith.constant 0 : i32
    %22 = arith.cmpi ne, %21, %c0_i32_23 : i32
    scf.if %22 {
      %c0_24 = arith.constant 0 : index
      %c0_25 = arith.constant 0 : index
      %23 = vector.load %arg13[%c0_24, %c0_25] : memref<16x32xf32, #tpu.memory_space<vmem>>, vector<16x32xf32>
      %c0_26 = arith.constant 0 : index
      %c0_27 = arith.constant 0 : index
      %24 = vector.load %arg7[%c0_26, %c0_27] : memref<1x32xf32, #tpu.memory_space<vmem>>, vector<1x32xf32>
      %25 = vector.broadcast %24 : vector<1x32xf32> to vector<16x32xf32>
      %26 = arith.addf %23, %25 : vector<16x32xf32>
      %27 = arith.truncf %26 : vector<16x32xf32> to vector<16x32xbf16>
      %c0_28 = arith.constant 0 : index
      %c0_29 = arith.constant 0 : index
      %28 = vector.load %arg10[%c0_28, %c0_29] : memref<16x32xbf16, #tpu.memory_space<vmem>>, vector<16x32xbf16>
      tpu.vector_store %arg10[%c0_28, %c0_29], %27 {strides = array<i32>} : memref<16x32xbf16, #tpu.memory_space<vmem>>, vector<16x32xbf16>,
      %c0_30 = arith.constant 0 : index
      %c0_31 = arith.constant 0 : index
      %29 = vector.load %arg14[%c0_30, %c0_31] : memref<16x32xf32, #tpu.memory_space<vmem>>, vector<16x32xf32>
      %c0_32 = arith.constant 0 : index
      %c0_33 = arith.constant 0 : index
      %30 = vector.load %arg8[%c0_32, %c0_33] : memref<1x32xf32, #tpu.memory_space<vmem>>, vector<1x32xf32>
      %31 = vector.broadcast %30 : vector<1x32xf32> to vector<16x32xf32>
      %32 = arith.addf %29, %31 : vector<16x32xf32>
      %33 = arith.truncf %32 : vector<16x32xf32> to vector<16x32xbf16>
      %c0_34 = arith.constant 0 : index
      %c0_35 = arith.constant 0 : index
      %34 = vector.load %arg11[%c0_34, %c0_35] : memref<16x32xbf16, #tpu.memory_space<vmem>>, vector<16x32xbf16>
      tpu.vector_store %arg11[%c0_34, %c0_35], %33 {strides = array<i32>} : memref<16x32xbf16, #tpu.memory_space<vmem>>, vector<16x32xbf16>,
      %c0_36 = arith.constant 0 : index
      %c0_37 = arith.constant 0 : index
      %35 = vector.load %arg15[%c0_36, %c0_37] : memref<16x32xf32, #tpu.memory_space<vmem>>, vector<16x32xf32>
      %c0_38 = arith.constant 0 : index
      %c0_39 = arith.constant 0 : index
      %36 = vector.load %arg9[%c0_38, %c0_39] : memref<1x32xf32, #tpu.memory_space<vmem>>, vector<1x32xf32>
      %37 = vector.broadcast %36 : vector<1x32xf32> to vector<16x32xf32>
      %38 = arith.addf %35, %37 : vector<16x32xf32>
      %39 = arith.truncf %38 : vector<16x32xf32> to vector<16x32xbf16>
      %c0_40 = arith.constant 0 : index
      %c0_41 = arith.constant 0 : index
      %40 = vector.load %arg12[%c0_40, %c0_41] : memref<16x32xbf16, #tpu.memory_space<vmem>>, vector<16x32xbf16>
      tpu.vector_store %arg12[%c0_40, %c0_41], %39 {strides = array<i32>} : memref<16x32xbf16, #tpu.memory_space<vmem>>, vector<16x32xbf16>,
    } else {
    }
    return
  }
  func.func @transform_0(%arg0: i32, %arg1: i32, %arg2: i32) -> (i32, i32) {
    %c0_i32 = arith.constant 0 : i32
    return %arg0, %arg2 : i32, i32
  }
  func.func @transform_1(%arg0: i32, %arg1: i32, %arg2: i32) -> (i32, i32) {
    %c0_i32 = arith.constant 0 : i32
    return %arg2, %arg1 : i32, i32
  }
  func.func @transform_2(%arg0: i32, %arg1: i32, %arg2: i32) -> (i32, i32) {
    %c0_i32 = arith.constant 0 : i32
    return %arg2, %arg1 : i32, i32
  }
  func.func @transform_3(%arg0: i32, %arg1: i32, %arg2: i32) -> (i32, i32) {
    %c0_i32 = arith.constant 0 : i32
    return %arg2, %arg1 : i32, i32
  }
  func.func @transform_4(%arg0: i32, %arg1: i32, %arg2: i32) -> (i32, i32) {
    %c0_i32 = arith.constant 0 : i32
    %c0_i32_0 = arith.constant 0 : i32
    return %c0_i32, %arg1 : i32, i32
  }
  func.func @transform_5(%arg0: i32, %arg1: i32, %arg2: i32) -> (i32, i32) {
    %c0_i32 = arith.constant 0 : i32
    %c0_i32_0 = arith.constant 0 : i32
    return %c0_i32, %arg1 : i32, i32
  }
  func.func @transform_6(%arg0: i32, %arg1: i32, %arg2: i32) -> (i32, i32) {
    %c0_i32 = arith.constant 0 : i32
    %c0_i32_0 = arith.constant 0 : i32
    return %c0_i32, %arg1 : i32, i32
  }
  func.func @transform_7(%arg0: i32, %arg1: i32, %arg2: i32) -> (i32, i32) {
    %c0_i32 = arith.constant 0 : i32
    return %arg0, %arg1 : i32, i32
  }
  func.func @transform_8(%arg0: i32, %arg1: i32, %arg2: i32) -> (i32, i32) {
    %c0_i32 = arith.constant 0 : i32
    return %arg0, %arg1 : i32, i32
  }
  func.func @transform_9(%arg0: i32, %arg1: i32, %arg2: i32) -> (i32, i32) {
    %c0_i32 = arith.constant 0 : i32
    return %arg0, %arg1 : i32, i32
  }
}

module attributes {stable_mosaic.version = 11 : i64} {
  func.func @_proj_kernel(%arg0: i32, %arg1: i32, %arg2: i32, %arg3: memref<16x32xbf16, #tpu.memory_space<vmem>>, %arg4: memref<32x32xbf16, #tpu.memory_space<vmem>>, %arg5: memref<1x32xf32, #tpu.memory_space<vmem>>, %arg6: memref<16x32xf32, #tpu.memory_space<vmem>>, %arg7: memref<16x32xf32, #tpu.memory_space<vmem>>) attributes {dimension_semantics = [#tpu.dimension_semantics<parallel>, #tpu.dimension_semantics<parallel>, #tpu.dimension_semantics<arbitrary>], iteration_bounds = array<i64: 1, 1, 1>, scalar_prefetch = 0 : i64, scratch_operands = 1 : i64, tpu.core_type = #tpu.core_type<tc>, window_params = [{transform_indices = @transform_0, window_bounds = array<i64: 16, 32>}, {transform_indices = @transform_1, window_bounds = array<i64: 32, 32>}, {transform_indices = @transform_2, window_bounds = array<i64: 1, 32>}, {transform_indices = @transform_3, window_bounds = array<i64: 16, 32>}]} {
    %c0_i32 = arith.constant 0 : i32
    %0 = arith.cmpi eq, %arg2, %c0_i32 : i32
    %1 = arith.extui %0 : i1 to i32
    %c0_i32_0 = arith.constant 0 : i32
    %2 = arith.cmpi ne, %1, %c0_i32_0 : i32
    scf.if %2 {
      %cst_10 = arith.constant 0.000000e+00 : f32
      %12 = vector.broadcast %cst_10 : f32 to vector<16x32xf32>
      %c0_11 = arith.constant 0 : index
      %c0_12 = arith.constant 0 : index
      %13 = vector.load %arg7[%c0_11, %c0_12] : memref<16x32xf32, #tpu.memory_space<vmem>>, vector<16x32xf32>
      tpu.vector_store %arg7[%c0_11, %c0_12], %12 {strides = array<i32>} : memref<16x32xf32, #tpu.memory_space<vmem>>, vector<16x32xf32>,
    } else {
    }
    %c0 = arith.constant 0 : index
    %c0_1 = arith.constant 0 : index
    %3 = vector.load %arg7[%c0, %c0_1] : memref<16x32xf32, #tpu.memory_space<vmem>>, vector<16x32xf32>
    %c0_2 = arith.constant 0 : index
    %c0_3 = arith.constant 0 : index
    %4 = vector.load %arg3[%c0_2, %c0_3] : memref<16x32xbf16, #tpu.memory_space<vmem>>, vector<16x32xbf16>
    %c0_4 = arith.constant 0 : index
    %c0_5 = arith.constant 0 : index
    %5 = vector.load %arg4[%c0_4, %c0_5] : memref<32x32xbf16, #tpu.memory_space<vmem>>, vector<32x32xbf16>
    %cst = arith.constant dense<0.000000e+00> : vector<16x32xf32>
    %6 = tpu.matmul %4, %5, %cst {dimension_numbers = #tpu.dot_dimension_numbers<[1], [0], [0], [1], [0, 0, 1, 1], [], []>} : vector<16x32xbf16>, vector<32x32xbf16>, vector<16x32xf32> -> vector<16x32xf32>
    %7 = arith.addf %3, %6 : vector<16x32xf32>
    %c0_6 = arith.constant 0 : index
    %c0_7 = arith.constant 0 : index
    %8 = vector.load %arg7[%c0_6, %c0_7] : memref<16x32xf32, #tpu.memory_space<vmem>>, vector<16x32xf32>
    tpu.vector_store %arg7[%c0_6, %c0_7], %7 {strides = array<i32>} : memref<16x32xf32, #tpu.memory_space<vmem>>, vector<16x32xf32>,
    %c0_i32_8 = arith.constant 0 : i32
    %9 = arith.cmpi eq, %arg2, %c0_i32_8 : i32
    %10 = arith.extui %9 : i1 to i32
    %c0_i32_9 = arith.constant 0 : i32
    %11 = arith.cmpi ne, %10, %c0_i32_9 : i32
    scf.if %11 {
      %c0_10 = arith.constant 0 : index
      %c0_11 = arith.constant 0 : index
      %12 = vector.load %arg7[%c0_10, %c0_11] : memref<16x32xf32, #tpu.memory_space<vmem>>, vector<16x32xf32>
      %c0_12 = arith.constant 0 : index
      %c0_13 = arith.constant 0 : index
      %13 = vector.load %arg5[%c0_12, %c0_13] : memref<1x32xf32, #tpu.memory_space<vmem>>, vector<1x32xf32>
      %14 = vector.broadcast %13 : vector<1x32xf32> to vector<16x32xf32>
      %15 = arith.addf %12, %14 : vector<16x32xf32>
      %c0_14 = arith.constant 0 : index
      %c0_15 = arith.constant 0 : index
      %16 = vector.load %arg6[%c0_14, %c0_15] : memref<16x32xf32, #tpu.memory_space<vmem>>, vector<16x32xf32>
      tpu.vector_store %arg6[%c0_14, %c0_15], %15 {strides = array<i32>} : memref<16x32xf32, #tpu.memory_space<vmem>>, vector<16x32xf32>,
    } else {
    }
    return
  }
  func.func @transform_0(%arg0: i32, %arg1: i32, %arg2: i32) -> (i32, i32) {
    %c0_i32 = arith.constant 0 : i32
    return %arg0, %arg2 : i32, i32
  }
  func.func @transform_1(%arg0: i32, %arg1: i32, %arg2: i32) -> (i32, i32) {
    %c0_i32 = arith.constant 0 : i32
    return %arg2, %arg1 : i32, i32
  }
  func.func @transform_2(%arg0: i32, %arg1: i32, %arg2: i32) -> (i32, i32) {
    %c0_i32 = arith.constant 0 : i32
    %c0_i32_0 = arith.constant 0 : i32
    return %c0_i32, %arg1 : i32, i32
  }
  func.func @transform_3(%arg0: i32, %arg1: i32, %arg2: i32) -> (i32, i32) {
    %c0_i32 = arith.constant 0 : i32
    return %arg0, %arg1 : i32, i32
  }
}

module attributes {stable_mosaic.version = 11 : i64} {
  func.func @_flash_attn_kernel(%arg0: i32, %arg1: i32, %arg2: i32, %arg3: memref<1x8x32xbf16, #tpu.memory_space<vmem>>, %arg4: memref<1x8x32xbf16, #tpu.memory_space<vmem>>, %arg5: memref<1x8x32xbf16, #tpu.memory_space<vmem>>, %arg6: memref<1x8x32xbf16, #tpu.memory_space<vmem>>, %arg7: memref<8x4xf32, #tpu.memory_space<vmem>>, %arg8: memref<8x4xf32, #tpu.memory_space<vmem>>, %arg9: memref<4x8x8xf32, #tpu.memory_space<vmem>>) attributes {dimension_semantics = [#tpu.dimension_semantics<parallel>, #tpu.dimension_semantics<parallel>, #tpu.dimension_semantics<arbitrary>], iteration_bounds = array<i64: 2, 1, 1>, scalar_prefetch = 0 : i64, scratch_operands = 3 : i64, tpu.core_type = #tpu.core_type<tc>, window_params = [{transform_indices = @transform_0, window_bounds = array<i64: 1, 8, 32>}, {transform_indices = @transform_1, window_bounds = array<i64: 1, 8, 32>}, {transform_indices = @transform_2, window_bounds = array<i64: 1, 8, 32>}, {transform_indices = @transform_3, window_bounds = array<i64: 1, 8, 32>}]} {
    %c0_i32 = arith.constant 0 : i32
    %0 = arith.cmpi eq, %arg2, %c0_i32 : i32
    %1 = arith.extui %0 : i1 to i32
    %c0_i32_0 = arith.constant 0 : i32
    %2 = arith.cmpi ne, %1, %c0_i32_0 : i32
    scf.if %2 {
      %cst_103 = arith.constant 0xFF800000 : f32
      %138 = vector.broadcast %cst_103 : f32 to vector<8x4xf32>
      %c0_104 = arith.constant 0 : index
      %c0_105 = arith.constant 0 : index
      %139 = vector.load %arg7[%c0_104, %c0_105] : memref<8x4xf32, #tpu.memory_space<vmem>>, vector<8x4xf32>
      tpu.vector_store %arg7[%c0_104, %c0_105], %138 {strides = array<i32>} : memref<8x4xf32, #tpu.memory_space<vmem>>, vector<8x4xf32>,
      %cst_106 = arith.constant 0.000000e+00 : f32
      %140 = vector.broadcast %cst_106 : f32 to vector<8x4xf32>
      %c0_107 = arith.constant 0 : index
      %c0_108 = arith.constant 0 : index
      %141 = vector.load %arg8[%c0_107, %c0_108] : memref<8x4xf32, #tpu.memory_space<vmem>>, vector<8x4xf32>
      tpu.vector_store %arg8[%c0_107, %c0_108], %140 {strides = array<i32>} : memref<8x4xf32, #tpu.memory_space<vmem>>, vector<8x4xf32>,
      %cst_109 = arith.constant 0.000000e+00 : f32
      %142 = vector.broadcast %cst_109 : f32 to vector<4x8x8xf32>
      %c0_110 = arith.constant 0 : index
      %c0_111 = arith.constant 0 : index
      %c0_112 = arith.constant 0 : index
      %143 = vector.load %arg9[%c0_110, %c0_111, %c0_112] : memref<4x8x8xf32, #tpu.memory_space<vmem>>, vector<4x8x8xf32>
      tpu.vector_store %arg9[%c0_110, %c0_111, %c0_112], %142 {strides = array<i32>} : memref<4x8x8xf32, #tpu.memory_space<vmem>>, vector<4x8x8xf32>,
    } else {
    }
    %c0 = arith.constant 0 : index
    %c0_1 = arith.constant 0 : index
    %c0_2 = arith.constant 0 : index
    %3 = vector.load %arg3[%c0, %c0_1, %c0_2] : memref<1x8x32xbf16, #tpu.memory_space<vmem>>, vector<1x8x8xbf16>
    %4 = vector.shape_cast %3 : vector<1x8x8xbf16> to vector<8x8xbf16>
    %c0_3 = arith.constant 0 : index
    %c0_4 = arith.constant 0 : index
    %c0_5 = arith.constant 0 : index
    %5 = vector.load %arg4[%c0_3, %c0_4, %c0_5] : memref<1x8x32xbf16, #tpu.memory_space<vmem>>, vector<1x8x8xbf16>
    %6 = vector.shape_cast %5 : vector<1x8x8xbf16> to vector<8x8xbf16>
    %c0_6 = arith.constant 0 : index
    %c0_7 = arith.constant 0 : index
    %c0_8 = arith.constant 0 : index
    %7 = vector.load %arg5[%c0_6, %c0_7, %c0_8] : memref<1x8x32xbf16, #tpu.memory_space<vmem>>, vector<1x8x8xbf16>
    %8 = vector.shape_cast %7 : vector<1x8x8xbf16> to vector<8x8xbf16>
    %cst = arith.constant dense<0.000000e+00> : vector<8x8xf32>
    %9 = tpu.matmul %4, %6, %cst {dimension_numbers = #tpu.dot_dimension_numbers<[1], [1], [0], [0], [0, 0, 1, 0], [], []>} : vector<8x8xbf16>, vector<8x8xbf16>, vector<8x8xf32> -> vector<8x8xf32>
    %c0_9 = arith.constant 0 : index
    %c0_10 = arith.constant 0 : index
    %10 = vector.load %arg7[%c0_9, %c0_10] : memref<8x4xf32, #tpu.memory_space<vmem>>, vector<8x1xf32>
    %cst_11 = arith.constant dense<0xFF800000> : vector<8xf32>
    %11 = vector.multi_reduction <maximumf>, %9, %cst_11 [1] : vector<8x8xf32> to vector<8xf32>
    %12 = vector.shape_cast %11 : vector<8xf32> to vector<8x1xf32>
    %13 = arith.maximumf %10, %12 : vector<8x1xf32>
    %14 = arith.subf %10, %13 : vector<8x1xf32>
    %15 = math.exp %14 : vector<8x1xf32>
    %16 = vector.broadcast %13 : vector<8x1xf32> to vector<8x8xf32>
    %17 = arith.subf %9, %16 : vector<8x8xf32>
    %18 = math.exp %17 : vector<8x8xf32>
    %c0_12 = arith.constant 0 : index
    %c0_13 = arith.constant 0 : index
    %19 = vector.load %arg8[%c0_12, %c0_13] : memref<8x4xf32, #tpu.memory_space<vmem>>, vector<8x1xf32>
    %20 = arith.mulf %15, %19 : vector<8x1xf32>
    %cst_14 = arith.constant dense<0.000000e+00> : vector<8xf32>
    %21 = vector.multi_reduction <add>, %18, %cst_14 [1] : vector<8x8xf32> to vector<8xf32>
    %22 = vector.shape_cast %21 : vector<8xf32> to vector<8x1xf32>
    %23 = arith.addf %20, %22 : vector<8x1xf32>
    %c0_15 = arith.constant 0 : index
    %c0_16 = arith.constant 0 : index
    %24 = vector.load %arg8[%c0_15, %c0_16] : memref<8x4xf32, #tpu.memory_space<vmem>>, vector<8x1xf32>
    tpu.vector_store %arg8[%c0_15, %c0_16], %23 {strides = array<i32>} : memref<8x4xf32, #tpu.memory_space<vmem>>, vector<8x1xf32>,
    %c0_17 = arith.constant 0 : index
    %c0_18 = arith.constant 0 : index
    %c0_19 = arith.constant 0 : index
    %25 = vector.load %arg9[%c0_17, %c0_18, %c0_19] : memref<4x8x8xf32, #tpu.memory_space<vmem>>, vector<1x8x8xf32>
    %26 = vector.shape_cast %25 : vector<1x8x8xf32> to vector<8x8xf32>
    %27 = vector.broadcast %15 : vector<8x1xf32> to vector<8x8xf32>
    %28 = arith.mulf %27, %26 : vector<8x8xf32>
    %29 = arith.truncf %18 : vector<8x8xf32> to vector<8x8xbf16>
    %cst_20 = arith.constant dense<0.000000e+00> : vector<8x8xf32>
    %30 = tpu.matmul %29, %8, %cst_20 {dimension_numbers = #tpu.dot_dimension_numbers<[1], [0], [0], [1], [0, 0, 1, 1], [], []>} : vector<8x8xbf16>, vector<8x8xbf16>, vector<8x8xf32> -> vector<8x8xf32>
    %31 = arith.addf %28, %30 : vector<8x8xf32>
    %c0_21 = arith.constant 0 : index
    %c0_22 = arith.constant 0 : index
    %c0_23 = arith.constant 0 : index
    %32 = vector.load %arg9[%c0_21, %c0_22, %c0_23] : memref<4x8x8xf32, #tpu.memory_space<vmem>>, vector<1x8x8xf32>
    %33 = vector.shape_cast %32 : vector<1x8x8xf32> to vector<8x8xf32>
    %34 = vector.shape_cast %31 : vector<8x8xf32> to vector<1x8x8xf32>
    tpu.vector_store %arg9[%c0_21, %c0_22, %c0_23], %34 {strides = array<i32>} : memref<4x8x8xf32, #tpu.memory_space<vmem>>, vector<1x8x8xf32>,
    %c0_24 = arith.constant 0 : index
    %c0_25 = arith.constant 0 : index
    %35 = vector.load %arg7[%c0_24, %c0_25] : memref<8x4xf32, #tpu.memory_space<vmem>>, vector<8x1xf32>
    tpu.vector_store %arg7[%c0_24, %c0_25], %13 {strides = array<i32>} : memref<8x4xf32, #tpu.memory_space<vmem>>, vector<8x1xf32>,
    %c0_26 = arith.constant 0 : index
    %c0_27 = arith.constant 0 : index
    %c8 = arith.constant 8 : index
    %36 = vector.load %arg3[%c0_26, %c0_27, %c8] : memref<1x8x32xbf16, #tpu.memory_space<vmem>>, vector<1x8x8xbf16>
    %37 = vector.shape_cast %36 : vector<1x8x8xbf16> to vector<8x8xbf16>
    %c0_28 = arith.constant 0 : index
    %c0_29 = arith.constant 0 : index
    %c8_30 = arith.constant 8 : index
    %38 = vector.load %arg4[%c0_28, %c0_29, %c8_30] : memref<1x8x32xbf16, #tpu.memory_space<vmem>>, vector<1x8x8xbf16>
    %39 = vector.shape_cast %38 : vector<1x8x8xbf16> to vector<8x8xbf16>
    %c0_31 = arith.constant 0 : index
    %c0_32 = arith.constant 0 : index
    %c8_33 = arith.constant 8 : index
    %40 = vector.load %arg5[%c0_31, %c0_32, %c8_33] : memref<1x8x32xbf16, #tpu.memory_space<vmem>>, vector<1x8x8xbf16>
    %41 = vector.shape_cast %40 : vector<1x8x8xbf16> to vector<8x8xbf16>
    %cst_34 = arith.constant dense<0.000000e+00> : vector<8x8xf32>
    %42 = tpu.matmul %37, %39, %cst_34 {dimension_numbers = #tpu.dot_dimension_numbers<[1], [1], [0], [0], [0, 0, 1, 0], [], []>} : vector<8x8xbf16>, vector<8x8xbf16>, vector<8x8xf32> -> vector<8x8xf32>
    %c0_35 = arith.constant 0 : index
    %c1 = arith.constant 1 : index
    %43 = vector.load %arg7[%c0_35, %c1] : memref<8x4xf32, #tpu.memory_space<vmem>>, vector<8x1xf32>
    %cst_36 = arith.constant dense<0xFF800000> : vector<8xf32>
    %44 = vector.multi_reduction <maximumf>, %42, %cst_36 [1] : vector<8x8xf32> to vector<8xf32>
    %45 = vector.shape_cast %44 : vector<8xf32> to vector<8x1xf32>
    %46 = arith.maximumf %43, %45 : vector<8x1xf32>
    %47 = arith.subf %43, %46 : vector<8x1xf32>
    %48 = math.exp %47 : vector<8x1xf32>
    %49 = vector.broadcast %46 : vector<8x1xf32> to vector<8x8xf32>
    %50 = arith.subf %42, %49 : vector<8x8xf32>
    %51 = math.exp %50 : vector<8x8xf32>
    %c0_37 = arith.constant 0 : index
    %c1_38 = arith.constant 1 : index
    %52 = vector.load %arg8[%c0_37, %c1_38] : memref<8x4xf32, #tpu.memory_space<vmem>>, vector<8x1xf32>
    %53 = arith.mulf %48, %52 : vector<8x1xf32>
    %cst_39 = arith.constant dense<0.000000e+00> : vector<8xf32>
    %54 = vector.multi_reduction <add>, %51, %cst_39 [1] : vector<8x8xf32> to vector<8xf32>
    %55 = vector.shape_cast %54 : vector<8xf32> to vector<8x1xf32>
    %56 = arith.addf %53, %55 : vector<8x1xf32>
    %c0_40 = arith.constant 0 : index
    %c1_41 = arith.constant 1 : index
    %57 = vector.load %arg8[%c0_40, %c1_41] : memref<8x4xf32, #tpu.memory_space<vmem>>, vector<8x1xf32>
    tpu.vector_store %arg8[%c0_40, %c1_41], %56 {strides = array<i32>} : memref<8x4xf32, #tpu.memory_space<vmem>>, vector<8x1xf32>,
    %c1_42 = arith.constant 1 : index
    %c0_43 = arith.constant 0 : index
    %c0_44 = arith.constant 0 : index
    %58 = vector.load %arg9[%c1_42, %c0_43, %c0_44] : memref<4x8x8xf32, #tpu.memory_space<vmem>>, vector<1x8x8xf32>
    %59 = vector.shape_cast %58 : vector<1x8x8xf32> to vector<8x8xf32>
    %60 = vector.broadcast %48 : vector<8x1xf32> to vector<8x8xf32>
    %61 = arith.mulf %60, %59 : vector<8x8xf32>
    %62 = arith.truncf %51 : vector<8x8xf32> to vector<8x8xbf16>
    %cst_45 = arith.constant dense<0.000000e+00> : vector<8x8xf32>
    %63 = tpu.matmul %62, %41, %cst_45 {dimension_numbers = #tpu.dot_dimension_numbers<[1], [0], [0], [1], [0, 0, 1, 1], [], []>} : vector<8x8xbf16>, vector<8x8xbf16>, vector<8x8xf32> -> vector<8x8xf32>
    %64 = arith.addf %61, %63 : vector<8x8xf32>
    %c1_46 = arith.constant 1 : index
    %c0_47 = arith.constant 0 : index
    %c0_48 = arith.constant 0 : index
    %65 = vector.load %arg9[%c1_46, %c0_47, %c0_48] : memref<4x8x8xf32, #tpu.memory_space<vmem>>, vector<1x8x8xf32>
    %66 = vector.shape_cast %65 : vector<1x8x8xf32> to vector<8x8xf32>
    %67 = vector.shape_cast %64 : vector<8x8xf32> to vector<1x8x8xf32>
    tpu.vector_store %arg9[%c1_46, %c0_47, %c0_48], %67 {strides = array<i32>} : memref<4x8x8xf32, #tpu.memory_space<vmem>>, vector<1x8x8xf32>,
    %c0_49 = arith.constant 0 : index
    %c1_50 = arith.constant 1 : index
    %68 = vector.load %arg7[%c0_49, %c1_50] : memref<8x4xf32, #tpu.memory_space<vmem>>, vector<8x1xf32>
    tpu.vector_store %arg7[%c0_49, %c1_50], %46 {strides = array<i32>} : memref<8x4xf32, #tpu.memory_space<vmem>>, vector<8x1xf32>,
    %c0_51 = arith.constant 0 : index
    %c0_52 = arith.constant 0 : index
    %c16 = arith.constant 16 : index
    %69 = vector.load %arg3[%c0_51, %c0_52, %c16] : memref<1x8x32xbf16, #tpu.memory_space<vmem>>, vector<1x8x8xbf16>
    %70 = vector.shape_cast %69 : vector<1x8x8xbf16> to vector<8x8xbf16>
    %c0_53 = arith.constant 0 : index
    %c0_54 = arith.constant 0 : index
    %c16_55 = arith.constant 16 : index
    %71 = vector.load %arg4[%c0_53, %c0_54, %c16_55] : memref<1x8x32xbf16, #tpu.memory_space<vmem>>, vector<1x8x8xbf16>
    %72 = vector.shape_cast %71 : vector<1x8x8xbf16> to vector<8x8xbf16>
    %c0_56 = arith.constant 0 : index
    %c0_57 = arith.constant 0 : index
    %c16_58 = arith.constant 16 : index
    %73 = vector.load %arg5[%c0_56, %c0_57, %c16_58] : memref<1x8x32xbf16, #tpu.memory_space<vmem>>, vector<1x8x8xbf16>
    %74 = vector.shape_cast %73 : vector<1x8x8xbf16> to vector<8x8xbf16>
    %cst_59 = arith.constant dense<0.000000e+00> : vector<8x8xf32>
    %75 = tpu.matmul %70, %72, %cst_59 {dimension_numbers = #tpu.dot_dimension_numbers<[1], [1], [0], [0], [0, 0, 1, 0], [], []>} : vector<8x8xbf16>, vector<8x8xbf16>, vector<8x8xf32> -> vector<8x8xf32>
    %c0_60 = arith.constant 0 : index
    %c2 = arith.constant 2 : index
    %76 = vector.load %arg7[%c0_60, %c2] : memref<8x4xf32, #tpu.memory_space<vmem>>, vector<8x1xf32>
    %cst_61 = arith.constant dense<0xFF800000> : vector<8xf32>
    %77 = vector.multi_reduction <maximumf>, %75, %cst_61 [1] : vector<8x8xf32> to vector<8xf32>
    %78 = vector.shape_cast %77 : vector<8xf32> to vector<8x1xf32>
    %79 = arith.maximumf %76, %78 : vector<8x1xf32>
    %80 = arith.subf %76, %79 : vector<8x1xf32>
    %81 = math.exp %80 : vector<8x1xf32>
    %82 = vector.broadcast %79 : vector<8x1xf32> to vector<8x8xf32>
    %83 = arith.subf %75, %82 : vector<8x8xf32>
    %84 = math.exp %83 : vector<8x8xf32>
    %c0_62 = arith.constant 0 : index
    %c2_63 = arith.constant 2 : index
    %85 = vector.load %arg8[%c0_62, %c2_63] : memref<8x4xf32, #tpu.memory_space<vmem>>, vector<8x1xf32>
    %86 = arith.mulf %81, %85 : vector<8x1xf32>
    %cst_64 = arith.constant dense<0.000000e+00> : vector<8xf32>
    %87 = vector.multi_reduction <add>, %84, %cst_64 [1] : vector<8x8xf32> to vector<8xf32>
    %88 = vector.shape_cast %87 : vector<8xf32> to vector<8x1xf32>
    %89 = arith.addf %86, %88 : vector<8x1xf32>
    %c0_65 = arith.constant 0 : index
    %c2_66 = arith.constant 2 : index
    %90 = vector.load %arg8[%c0_65, %c2_66] : memref<8x4xf32, #tpu.memory_space<vmem>>, vector<8x1xf32>
    tpu.vector_store %arg8[%c0_65, %c2_66], %89 {strides = array<i32>} : memref<8x4xf32, #tpu.memory_space<vmem>>, vector<8x1xf32>,
    %c2_67 = arith.constant 2 : index
    %c0_68 = arith.constant 0 : index
    %c0_69 = arith.constant 0 : index
    %91 = vector.load %arg9[%c2_67, %c0_68, %c0_69] : memref<4x8x8xf32, #tpu.memory_space<vmem>>, vector<1x8x8xf32>
    %92 = vector.shape_cast %91 : vector<1x8x8xf32> to vector<8x8xf32>
    %93 = vector.broadcast %81 : vector<8x1xf32> to vector<8x8xf32>
    %94 = arith.mulf %93, %92 : vector<8x8xf32>
    %95 = arith.truncf %84 : vector<8x8xf32> to vector<8x8xbf16>
    %cst_70 = arith.constant dense<0.000000e+00> : vector<8x8xf32>
    %96 = tpu.matmul %95, %74, %cst_70 {dimension_numbers = #tpu.dot_dimension_numbers<[1], [0], [0], [1], [0, 0, 1, 1], [], []>} : vector<8x8xbf16>, vector<8x8xbf16>, vector<8x8xf32> -> vector<8x8xf32>
    %97 = arith.addf %94, %96 : vector<8x8xf32>
    %c2_71 = arith.constant 2 : index
    %c0_72 = arith.constant 0 : index
    %c0_73 = arith.constant 0 : index
    %98 = vector.load %arg9[%c2_71, %c0_72, %c0_73] : memref<4x8x8xf32, #tpu.memory_space<vmem>>, vector<1x8x8xf32>
    %99 = vector.shape_cast %98 : vector<1x8x8xf32> to vector<8x8xf32>
    %100 = vector.shape_cast %97 : vector<8x8xf32> to vector<1x8x8xf32>
    tpu.vector_store %arg9[%c2_71, %c0_72, %c0_73], %100 {strides = array<i32>} : memref<4x8x8xf32, #tpu.memory_space<vmem>>, vector<1x8x8xf32>,
    %c0_74 = arith.constant 0 : index
    %c2_75 = arith.constant 2 : index
    %101 = vector.load %arg7[%c0_74, %c2_75] : memref<8x4xf32, #tpu.memory_space<vmem>>, vector<8x1xf32>
    tpu.vector_store %arg7[%c0_74, %c2_75], %79 {strides = array<i32>} : memref<8x4xf32, #tpu.memory_space<vmem>>, vector<8x1xf32>,
    %c0_76 = arith.constant 0 : index
    %c0_77 = arith.constant 0 : index
    %c24 = arith.constant 24 : index
    %102 = vector.load %arg3[%c0_76, %c0_77, %c24] : memref<1x8x32xbf16, #tpu.memory_space<vmem>>, vector<1x8x8xbf16>
    %103 = vector.shape_cast %102 : vector<1x8x8xbf16> to vector<8x8xbf16>
    %c0_78 = arith.constant 0 : index
    %c0_79 = arith.constant 0 : index
    %c24_80 = arith.constant 24 : index
    %104 = vector.load %arg4[%c0_78, %c0_79, %c24_80] : memref<1x8x32xbf16, #tpu.memory_space<vmem>>, vector<1x8x8xbf16>
    %105 = vector.shape_cast %104 : vector<1x8x8xbf16> to vector<8x8xbf16>
    %c0_81 = arith.constant 0 : index
    %c0_82 = arith.constant 0 : index
    %c24_83 = arith.constant 24 : index
    %106 = vector.load %arg5[%c0_81, %c0_82, %c24_83] : memref<1x8x32xbf16, #tpu.memory_space<vmem>>, vector<1x8x8xbf16>
    %107 = vector.shape_cast %106 : vector<1x8x8xbf16> to vector<8x8xbf16>
    %cst_84 = arith.constant dense<0.000000e+00> : vector<8x8xf32>
    %108 = tpu.matmul %103, %105, %cst_84 {dimension_numbers = #tpu.dot_dimension_numbers<[1], [1], [0], [0], [0, 0, 1, 0], [], []>} : vector<8x8xbf16>, vector<8x8xbf16>, vector<8x8xf32> -> vector<8x8xf32>
    %c0_85 = arith.constant 0 : index
    %c3 = arith.constant 3 : index
    %109 = vector.load %arg7[%c0_85, %c3] : memref<8x4xf32, #tpu.memory_space<vmem>>, vector<8x1xf32>
    %cst_86 = arith.constant dense<0xFF800000> : vector<8xf32>
    %110 = vector.multi_reduction <maximumf>, %108, %cst_86 [1] : vector<8x8xf32> to vector<8xf32>
    %111 = vector.shape_cast %110 : vector<8xf32> to vector<8x1xf32>
    %112 = arith.maximumf %109, %111 : vector<8x1xf32>
    %113 = arith.subf %109, %112 : vector<8x1xf32>
    %114 = math.exp %113 : vector<8x1xf32>
    %115 = vector.broadcast %112 : vector<8x1xf32> to vector<8x8xf32>
    %116 = arith.subf %108, %115 : vector<8x8xf32>
    %117 = math.exp %116 : vector<8x8xf32>
    %c0_87 = arith.constant 0 : index
    %c3_88 = arith.constant 3 : index
    %118 = vector.load %arg8[%c0_87, %c3_88] : memref<8x4xf32, #tpu.memory_space<vmem>>, vector<8x1xf32>
    %119 = arith.mulf %114, %118 : vector<8x1xf32>
    %cst_89 = arith.constant dense<0.000000e+00> : vector<8xf32>
    %120 = vector.multi_reduction <add>, %117, %cst_89 [1] : vector<8x8xf32> to vector<8xf32>
    %121 = vector.shape_cast %120 : vector<8xf32> to vector<8x1xf32>
    %122 = arith.addf %119, %121 : vector<8x1xf32>
    %c0_90 = arith.constant 0 : index
    %c3_91 = arith.constant 3 : index
    %123 = vector.load %arg8[%c0_90, %c3_91] : memref<8x4xf32, #tpu.memory_space<vmem>>, vector<8x1xf32>
    tpu.vector_store %arg8[%c0_90, %c3_91], %122 {strides = array<i32>} : memref<8x4xf32, #tpu.memory_space<vmem>>, vector<8x1xf32>,
    %c3_92 = arith.constant 3 : index
    %c0_93 = arith.constant 0 : index
    %c0_94 = arith.constant 0 : index
    %124 = vector.load %arg9[%c3_92, %c0_93, %c0_94] : memref<4x8x8xf32, #tpu.memory_space<vmem>>, vector<1x8x8xf32>
    %125 = vector.shape_cast %124 : vector<1x8x8xf32> to vector<8x8xf32>
    %126 = vector.broadcast %114 : vector<8x1xf32> to vector<8x8xf32>
    %127 = arith.mulf %126, %125 : vector<8x8xf32>
    %128 = arith.truncf %117 : vector<8x8xf32> to vector<8x8xbf16>
    %cst_95 = arith.constant dense<0.000000e+00> : vector<8x8xf32>
    %129 = tpu.matmul %128, %107, %cst_95 {dimension_numbers = #tpu.dot_dimension_numbers<[1], [0], [0], [1], [0, 0, 1, 1], [], []>} : vector<8x8xbf16>, vector<8x8xbf16>, vector<8x8xf32> -> vector<8x8xf32>
    %130 = arith.addf %127, %129 : vector<8x8xf32>
    %c3_96 = arith.constant 3 : index
    %c0_97 = arith.constant 0 : index
    %c0_98 = arith.constant 0 : index
    %131 = vector.load %arg9[%c3_96, %c0_97, %c0_98] : memref<4x8x8xf32, #tpu.memory_space<vmem>>, vector<1x8x8xf32>
    %132 = vector.shape_cast %131 : vector<1x8x8xf32> to vector<8x8xf32>
    %133 = vector.shape_cast %130 : vector<8x8xf32> to vector<1x8x8xf32>
    tpu.vector_store %arg9[%c3_96, %c0_97, %c0_98], %133 {strides = array<i32>} : memref<4x8x8xf32, #tpu.memory_space<vmem>>, vector<1x8x8xf32>,
    %c0_99 = arith.constant 0 : index
    %c3_100 = arith.constant 3 : index
    %134 = vector.load %arg7[%c0_99, %c3_100] : memref<8x4xf32, #tpu.memory_space<vmem>>, vector<8x1xf32>
    tpu.vector_store %arg7[%c0_99, %c3_100], %112 {strides = array<i32>} : memref<8x4xf32, #tpu.memory_space<vmem>>, vector<8x1xf32>,
    %c0_i32_101 = arith.constant 0 : i32
    %135 = arith.cmpi eq, %arg2, %c0_i32_101 : i32
    %136 = arith.extui %135 : i1 to i32
    %c0_i32_102 = arith.constant 0 : i32
    %137 = arith.cmpi ne, %136, %c0_i32_102 : i32
    scf.if %137 {
      %c0_103 = arith.constant 0 : index
      %c0_104 = arith.constant 0 : index
      %138 = vector.load %arg8[%c0_103, %c0_104] : memref<8x4xf32, #tpu.memory_space<vmem>>, vector<8x1xf32>
      %139 = tpu.reciprocal %138 : vector<8x1xf32> -> vector<8x1xf32>
      %c0_105 = arith.constant 0 : index
      %c0_106 = arith.constant 0 : index
      %c0_107 = arith.constant 0 : index
      %140 = vector.load %arg9[%c0_105, %c0_106, %c0_107] : memref<4x8x8xf32, #tpu.memory_space<vmem>>, vector<1x8x8xf32>
      %141 = vector.shape_cast %140 : vector<1x8x8xf32> to vector<8x8xf32>
      %142 = vector.broadcast %139 : vector<8x1xf32> to vector<8x8xf32>
      %143 = arith.mulf %141, %142 : vector<8x8xf32>
      %144 = arith.truncf %143 : vector<8x8xf32> to vector<8x8xbf16>
      %c0_108 = arith.constant 0 : index
      %c0_109 = arith.constant 0 : index
      %c0_110 = arith.constant 0 : index
      %145 = vector.load %arg6[%c0_108, %c0_109, %c0_110] : memref<1x8x32xbf16, #tpu.memory_space<vmem>>, vector<1x8x8xbf16>
      %146 = vector.shape_cast %145 : vector<1x8x8xbf16> to vector<8x8xbf16>
      %147 = vector.shape_cast %144 : vector<8x8xbf16> to vector<1x8x8xbf16>
      tpu.vector_store %arg6[%c0_108, %c0_109, %c0_110], %147 {strides = array<i32>} : memref<1x8x32xbf16, #tpu.memory_space<vmem>>, vector<1x8x8xbf16>,
      %c0_111 = arith.constant 0 : index
      %c1_112 = arith.constant 1 : index
      %148 = vector.load %arg8[%c0_111, %c1_112] : memref<8x4xf32, #tpu.memory_space<vmem>>, vector<8x1xf32>
      %149 = tpu.reciprocal %148 : vector<8x1xf32> -> vector<8x1xf32>
      %c1_113 = arith.constant 1 : index
      %c0_114 = arith.constant 0 : index
      %c0_115 = arith.constant 0 : index
      %150 = vector.load %arg9[%c1_113, %c0_114, %c0_115] : memref<4x8x8xf32, #tpu.memory_space<vmem>>, vector<1x8x8xf32>
      %151 = vector.shape_cast %150 : vector<1x8x8xf32> to vector<8x8xf32>
      %152 = vector.broadcast %149 : vector<8x1xf32> to vector<8x8xf32>
      %153 = arith.mulf %151, %152 : vector<8x8xf32>
      %154 = arith.truncf %153 : vector<8x8xf32> to vector<8x8xbf16>
      %c0_116 = arith.constant 0 : index
      %c0_117 = arith.constant 0 : index
      %c8_118 = arith.constant 8 : index
      %155 = vector.load %arg6[%c0_116, %c0_117, %c8_118] : memref<1x8x32xbf16, #tpu.memory_space<vmem>>, vector<1x8x8xbf16>
      %156 = vector.shape_cast %155 : vector<1x8x8xbf16> to vector<8x8xbf16>
      %157 = vector.shape_cast %154 : vector<8x8xbf16> to vector<1x8x8xbf16>
      tpu.vector_store %arg6[%c0_116, %c0_117, %c8_118], %157 {strides = array<i32>} : memref<1x8x32xbf16, #tpu.memory_space<vmem>>, vector<1x8x8xbf16>,
      %c0_119 = arith.constant 0 : index
      %c2_120 = arith.constant 2 : index
      %158 = vector.load %arg8[%c0_119, %c2_120] : memref<8x4xf32, #tpu.memory_space<vmem>>, vector<8x1xf32>
      %159 = tpu.reciprocal %158 : vector<8x1xf32> -> vector<8x1xf32>
      %c2_121 = arith.constant 2 : index
      %c0_122 = arith.constant 0 : index
      %c0_123 = arith.constant 0 : index
      %160 = vector.load %arg9[%c2_121, %c0_122, %c0_123] : memref<4x8x8xf32, #tpu.memory_space<vmem>>, vector<1x8x8xf32>
      %161 = vector.shape_cast %160 : vector<1x8x8xf32> to vector<8x8xf32>
      %162 = vector.broadcast %159 : vector<8x1xf32> to vector<8x8xf32>
      %163 = arith.mulf %161, %162 : vector<8x8xf32>
      %164 = arith.truncf %163 : vector<8x8xf32> to vector<8x8xbf16>
      %c0_124 = arith.constant 0 : index
      %c0_125 = arith.constant 0 : index
      %c16_126 = arith.constant 16 : index
      %165 = vector.load %arg6[%c0_124, %c0_125, %c16_126] : memref<1x8x32xbf16, #tpu.memory_space<vmem>>, vector<1x8x8xbf16>
      %166 = vector.shape_cast %165 : vector<1x8x8xbf16> to vector<8x8xbf16>
      %167 = vector.shape_cast %164 : vector<8x8xbf16> to vector<1x8x8xbf16>
      tpu.vector_store %arg6[%c0_124, %c0_125, %c16_126], %167 {strides = array<i32>} : memref<1x8x32xbf16, #tpu.memory_space<vmem>>, vector<1x8x8xbf16>,
      %c0_127 = arith.constant 0 : index
      %c3_128 = arith.constant 3 : index
      %168 = vector.load %arg8[%c0_127, %c3_128] : memref<8x4xf32, #tpu.memory_space<vmem>>, vector<8x1xf32>
      %169 = tpu.reciprocal %168 : vector<8x1xf32> -> vector<8x1xf32>
      %c3_129 = arith.constant 3 : index
      %c0_130 = arith.constant 0 : index
      %c0_131 = arith.constant 0 : index
      %170 = vector.load %arg9[%c3_129, %c0_130, %c0_131] : memref<4x8x8xf32, #tpu.memory_space<vmem>>, vector<1x8x8xf32>
      %171 = vector.shape_cast %170 : vector<1x8x8xf32> to vector<8x8xf32>
      %172 = vector.broadcast %169 : vector<8x1xf32> to vector<8x8xf32>
      %173 = arith.mulf %171, %172 : vector<8x8xf32>
      %174 = arith.truncf %173 : vector<8x8xf32> to vector<8x8xbf16>
      %c0_132 = arith.constant 0 : index
      %c0_133 = arith.constant 0 : index
      %c24_134 = arith.constant 24 : index
      %175 = vector.load %arg6[%c0_132, %c0_133, %c24_134] : memref<1x8x32xbf16, #tpu.memory_space<vmem>>, vector<1x8x8xbf16>
      %176 = vector.shape_cast %175 : vector<1x8x8xbf16> to vector<8x8xbf16>
      %177 = vector.shape_cast %174 : vector<8x8xbf16> to vector<1x8x8xbf16>
      tpu.vector_store %arg6[%c0_132, %c0_133, %c24_134], %177 {strides = array<i32>} : memref<1x8x32xbf16, #tpu.memory_space<vmem>>, vector<1x8x8xbf16>,
    } else {
    }
    return
  }
  func.func @transform_0(%arg0: i32, %arg1: i32, %arg2: i32) -> (i32, i32, i32) {
    %c0_i32 = arith.constant 0 : i32
    %c0_i32_0 = arith.constant 0 : i32
    return %arg0, %arg1, %c0_i32 : i32, i32, i32
  }
  func.func @transform_1(%arg0: i32, %arg1: i32, %arg2: i32) -> (i32, i32, i32) {
    %c0_i32 = arith.constant 0 : i32
    %c0_i32_0 = arith.constant 0 : i32
    return %arg0, %arg2, %c0_i32 : i32, i32, i32
  }
  func.func @transform_2(%arg0: i32, %arg1: i32, %arg2: i32) -> (i32, i32, i32) {
    %c0_i32 = arith.constant 0 : i32
    %c0_i32_0 = arith.constant 0 : i32
    return %arg0, %arg2, %c0_i32 : i32, i32, i32
  }
  func.func @transform_3(%arg0: i32, %arg1: i32, %arg2: i32) -> (i32, i32, i32) {
    %c0_i32 = arith.constant 0 : i32
    %c0_i32_0 = arith.constant 0 : i32
    return %arg0, %arg1, %c0_i32 : i32, i32, i32
  }
}

</mosaic_0001>

<llo_original>
// kernel: dot_product_attention.5
$region0: #{dot_product_attention.5}
  #allocation0 [shape = 'u32[]', space=smem, size = 0x4, offset = 0x4, fixed_abs, tag = 'smem constant byte address 0x4 - core index']
  #allocation1 [shape = 'u32[144,128]{1,0:T(1,128)}', space=vmem, size = 0x12000, scoped, tag = 'internal scratch']
  #allocation2 [shape = 'f32[16,32]{1,0:T(8,128)}', space=vmem, size = 0x2000, scoped, tag = 'scratch operand']
  %s0 = inlined_call_operand.vmem [shape: bf16[16,32], index: 0, kind: input, shape index: {}]
  %s1 = inlined_call_operand.vmem [shape: bf16[32,32], index: 1, kind: input, shape index: {}]
  %s2 = inlined_call_operand.vmem [shape: f32[1,32], index: 2, kind: input, shape index: {}]
  %s3 = inlined_call_operand.hbm [shape: f32[16,32], index: 3, kind: output, shape index: {}]
  %s4 = sld [smem:[#allocation0]]
  $region30: #{dot_product_attention.5} parent=0
    _
  %s6 = ssub.s32 1, %s4
  %s7 = scalar_select 0, %s6, %s4
  $region1: #{dot_product_attention.5} parent=0
    #allocation3 [shape = 'u8[8192]{0}', space=vmem, size = 0x2000, scoped, tag = 'output window, operand 0, single buffered']
    #allocation4 [shape = 's32[1]{0}', space=sflag, size = 0x4, scoped, tag = 'scoped memory for dot_product_attention.5']
    %8 = vsyncpa [#allocation4], 0
    // Predicated region
    $region2: #{dot_product_attention.5} parent=1 // pred_check
      _
    $region3: #{dot_product_attention.5} parent=1 // pred_check_branch
      %10 = sbr.rel (0) target = $region5
    $region4: #{dot_product_attention.5} parent=1 // pred_region
      _
    $region5: #{dot_product_attention.5} parent=1 // pred_fallthru
      _
    // Predicated region
    $region6: #{dot_product_attention.5} parent=1 // pred_check
      _
    $region7: #{dot_product_attention.5} parent=1 // pred_check_branch
      %12 = sbr.rel (0) target = $region9
    $region8: #{dot_product_attention.5} parent=1 // pred_region
      _
    $region9: #{dot_product_attention.5} parent=1 // pred_fallthru
      _
    // Predicated region
    $region10: #{dot_product_attention.5} parent=1 // pred_check
      _
    $region11: #{dot_product_attention.5} parent=1 // pred_check_branch
      %14 = sbr.rel (0) target = $region13
    $region12: #{dot_product_attention.5} parent=1 // pred_region
      _
    $region13: #{dot_product_attention.5} parent=1 // pred_fallthru
      _
    %p16 = scmp.eq.s32.totalorder 0, 0
    // Predicated region
    $region14: #{dot_product_attention.5} parent=1 // pred_check
      %p17 = pneg %p16
    $region15: #{dot_product_attention.5} parent=1 // pred_check_branch
      %19 = sbr.rel (%p17) target = $region17
    $region16: #{dot_product_attention.5} parent=1 // pred_region
      %vm20 = vcmask 261120
      %21 = vst.msk [vmem:[#allocation2] sm:$0xff] %vm20, 0.0
      %22 = vst.msk [vmem:[#allocation2 + $0x8] sm:$0xff] %vm20, 0.0
    $region17: #{dot_product_attention.5} parent=1 // pred_fallthru
      _
    %v23 = vld [vmem:[#allocation2] sm:$0xff]
    %v24 = vld [vmem:[#allocation2 + $0x8] sm:$0xff]
    %v25 = vld [vmem:[%s0] sm:$0xf]
    %v26 = vld [vmem:[%s0 + $0x4] sm:$0xf]
    %v27 = vld [vmem:[%s1] sm:$0xf]
    %v28 = vld [vmem:[%s1 + $0x4] sm:$0xf]
    %v29 = vld [vmem:[%s1 + $0x8] sm:$0xf]
    %v30 = vld [vmem:[%s1 + $0xc] sm:$0xf]
    %v33 = vunpack.c.l.b16 %v25
    %v34 = vunpack.c.l.b16 %v26
    %v35 = vpack.c.b16 %v34, %v33
    %v40 = vunpack.c.l.b16 %v27
    %v41 = vunpack.c.l.b16 %v28
    %v42 = vunpack.c.l.b16 %v29
    %v43 = vunpack.c.l.b16 %v30
    %v44 = vpack.c.b16 %v41, %v40
    %v45 = vpack.c.b16 %v43, %v42
    %vm48 = vcmask 261120
    %v50 = vsel %vm48, %v35, 0
    %52 = vmatprep.subr.bf16.mxu0 0
    %53 = vmatpush1.bf16.msra.mxu0 0
    %54 = vmatprep.subr.bf16.mxu0 0
    %55 = vmatpush1.bf16.msra.mxu0 0
    %56 = vmatprep.subr.bf16.mxu0 0
    %57 = vmatpush1.bf16.msra.mxu0 0
    %58 = vmatprep.subr.bf16.mxu0 0
    %59 = vmatpush1.bf16.msra.mxu0 0
    %60 = vmatprep.subr.bf16.mxu0 0
    %61 = vmatpush1.bf16.msra.mxu0 0
    %62 = vmatprep.subr.bf16.mxu0 0
    %63 = vmatpush1.bf16.msra.mxu0 0
    %64 = vmatprep.subr.bf16.mxu0 0
    %65 = vmatpush1.bf16.msra.mxu0 %v45
    %66 = vmatprep.subr.bf16.mxu0 0
    %67 = vmatpush1.bf16.msra.mxu0 %v44
    %68 = vmatprep.subr.bf16.mxu0 0
    %69 = vmatpush2.bf16.msra.mxu0 0
    %70 = vmatprep.subr.bf16.mxu0 0
    %71 = vmatpush2.bf16.msra.mxu0 0
    %72 = vmatprep.subr.bf16.mxu0 0
    %73 = vmatpush2.bf16.msra.mxu0 0
    %74 = vmatprep.subr.bf16.mxu0 0
    %75 = vmatpush2.bf16.msra.mxu0 0
    %76 = vmatprep.subr.bf16.mxu0 0
    %77 = vmatpush2.bf16.msra.mxu0 0
    %78 = vmatprep.subr.bf16.mxu0 0
    %79 = vmatpush2.bf16.msra.mxu0 0
    %80 = vmatprep.subr.bf16.mxu0 0
    %81 = vmatpush2.bf16.msra.mxu0 0
    %82 = vmatprep.subr.bf16.mxu0 0
    %83 = vmatpush2.bf16.msra.mxu0 0
    %84 = vmatprep.mubr.bf16.mxu0 0
    %85 = vmatmul.mubr.bf16.gmra.mxu0 %v50
    %v86 = vpop.f32.mrf.mxu0
    %v87 = vadd.f32 0.0, %v86
    %v88 = vpop.f32.mrf.mxu0
    %v89 = vpop.f32.mrf.mxu0
    %v90 = vadd.f32 0.0, %v89
    %v91 = vpop.f32.mrf.mxu0
    %92 = vdwg.mxu0
    %v93 = vadd.f32 %v23, %v87
    %v94 = vadd.f32 %v24, %v90
    %95 = vst.msk [vmem:[#allocation2] sm:$0xff] %vm48, %v93
    %96 = vst.msk [vmem:[#allocation2 + $0x8] sm:$0xff] %vm48, %v94
    // Predicated region
    $region18: #{dot_product_attention.5} parent=1 // pred_check
      %p97 = pneg %p16
    $region19: #{dot_product_attention.5} parent=1 // pred_check_branch
      %99 = sbr.rel (%p97) target = $region21
    $region20: #{dot_product_attention.5} parent=1 // pred_region
      %v100 = vld [vmem:[#allocation2] sm:$0xff]
      %v101 = vld [vmem:[#allocation2 + $0x8] sm:$0xff]
      %v102 = vld [vmem:[%s2] sm:$0x1]
      %v104 = vlaneseq
      %v105 = vshrl.u32 %v104, 7
      %v106 = vsub.s32 0, %v105
      %v107 = vrot.slane %v102, %v106
      %v109 = vadd.f32 %v100, %v107
      %v110 = vadd.f32 %v101, %v107
      %111 = vst.msk [vmem:[#allocation3] sm:$0xff] %vm48, %v109
      %112 = vst.msk [vmem:[#allocation3 + $0x8] sm:$0xff] %vm48, %v110
    $region21: #{dot_product_attention.5} parent=1 // pred_fallthru
      _
    // Predicated region
    $region22: #{dot_product_attention.5} parent=1 // pred_check
      _
    $region23: #{dot_product_attention.5} parent=1 // pred_check_branch
      %114 = sbr.rel (0) target = $region25
    $region24: #{dot_product_attention.5} parent=1 // pred_region
      %s116 = ssub.s32 256, 256
      %117 = vsyncadd [#allocation4], %s116
      %s118 = sshll.u32 [#allocation3], 4
      %s119 = int_to_ptr.vmem [resolvable:$true] %s118
      %124 = dma.vmem_to_hbm [thread:$0]  %s119, 256, %s3, [#allocation4], 128, 128, 8
    $region25: #{dot_product_attention.5} parent=1 // pred_fallthru
      _
    // Predicated region
    $region26: #{dot_product_attention.5} parent=1 // pred_check
      _
    $region27: #{dot_product_attention.5} parent=1 // pred_check_branch
      %126 = sbr.rel (0) target = $region29
    $region28: #{dot_product_attention.5} parent=1 // pred_region
      %127 = dma.done [#allocation4], 256
    $region29: #{dot_product_attention.5} parent=1 // pred_fallthru
      _
    %128 = vsyncpa [#allocation4], 1

// kernel: dot_product_attention.3
$region0: #{dot_product_attention.3}
  #allocation0 [shape = 'u32[]', space=smem, size = 0x4, offset = 0x4, fixed_abs, tag = 'smem constant byte address 0x4 - core index']
  #allocation1 [shape = 'u32[144,128]{1,0:T(1,128)}', space=vmem, size = 0x12000, scoped, tag = 'internal scratch']
  #allocation2 [shape = 'f32[16,32]{1,0:T(8,128)}', space=vmem, size = 0x2000, scoped, tag = 'scratch operand']
  #allocation3 [shape = 'f32[16,32]{1,0:T(8,128)}', space=vmem, size = 0x2000, scoped, tag = 'scratch operand']
  #allocation4 [shape = 'f32[16,32]{1,0:T(8,128)}', space=vmem, size = 0x2000, scoped, tag = 'scratch operand']
  %s0 = inlined_call_operand.hbm [shape: f32[16,32], index: 0, kind: input, shape index: {}]
  %s1 = inlined_call_operand.hbm [shape: bf16[32,32], index: 1, kind: input, shape index: {}]
  %s2 = inlined_call_operand.hbm [shape: bf16[32,32], index: 2, kind: input, shape index: {}]
  %s3 = inlined_call_operand.vmem [shape: bf16[32,32], index: 3, kind: input, shape index: {}]
  %s4 = inlined_call_operand.hbm [shape: f32[1,32], index: 4, kind: input, shape index: {}]
  %s5 = inlined_call_operand.hbm [shape: f32[1,32], index: 5, kind: input, shape index: {}]
  %s6 = inlined_call_operand.hbm [shape: f32[1,32], index: 6, kind: input, shape index: {}]
  %s7 = inlined_call_operand.vmem [shape: bf16[16,32], index: 7, kind: output, shape index: {0}]
  %s8 = inlined_call_operand.vmem [shape: bf16[16,32], index: 8, kind: output, shape index: {1}]
  %s9 = inlined_call_operand.vmem [shape: bf16[16,32], index: 9, kind: output, shape index: {2}]
  %10 = xla_tuple %s7, %s8, %s9
  %s11 = sld [smem:[#allocation0]]
  $region86: #{dot_product_attention.3} parent=0
    _
  %s13 = ssub.s32 1, %s11
  %s14 = scalar_select 0, %s13, %s11
  $region1: #{dot_product_attention.3} parent=0
    #allocation5 [shape = 'u8[8192]{0}', space=vmem, size = 0x2000, scoped, tag = 'input window, operand 0, single buffered']
    #allocation6 [shape = 's32[1]{0}', space=sflag, size = 0x4, scoped, tag = 'scoped memory for dot_product_attention.3']
    #allocation7 [shape = 'u8[8192]{0}', space=vmem, size = 0x2000, scoped, tag = 'input window, operand 1, single buffered']
    #allocation8 [shape = 's32[1]{0}', space=sflag, size = 0x4, scoped, tag = 'scoped memory for dot_product_attention.3']
    #allocation9 [shape = 'u8[8192]{0}', space=vmem, size = 0x2000, scoped, tag = 'input window, operand 2, single buffered']
    #allocation10 [shape = 'u8[512]{0}', space=vmem, size = 0x400, scoped, tag = 'input window, operand 4, single buffered']
    #allocation11 [shape = 's32[1]{0}', space=sflag, size = 0x4, scoped, tag = 'scoped memory for dot_product_attention.3']
    #allocation12 [shape = 'u8[512]{0}', space=vmem, size = 0x400, scoped, tag = 'input window, operand 5, single buffered']
    #allocation13 [shape = 'u8[512]{0}', space=vmem, size = 0x400, scoped, tag = 'input window, operand 6, single buffered']
    #allocation14 [shape = 's32[1]{0}', space=sflag, size = 0x4, scoped, tag = 'scoped memory for dot_product_attention.3']
    %15 = vsyncpa [#allocation6], 0
    %16 = vsyncpa [#allocation8], 0
    %17 = vsyncpa [#allocation11], 0
    %18 = vsyncpa [#allocation14], 0
    // Predicated region
    $region2: #{dot_product_attention.3} parent=1 // pred_check
      _
    $region3: #{dot_product_attention.3} parent=1 // pred_check_branch
      %20 = sbr.rel (0) target = $region5
    $region4: #{dot_product_attention.3} parent=1 // pred_region
      %s22 = ssub.s32 256, 256
      %23 = vsyncadd [#allocation6], %s22
      %s24 = sshll.u32 [#allocation5], 4
      %s25 = int_to_ptr.vmem [resolvable:$true] %s24
      %30 = dma.hbm_to_vmem [thread:$0]  %s0, 256, %s25, [#allocation6], 128, 128, 8
    $region5: #{dot_product_attention.3} parent=1 // pred_fallthru
      _
    // Predicated region
    $region6: #{dot_product_attention.3} parent=1 // pred_check
      _
    $region7: #{dot_product_attention.3} parent=1 // pred_check_branch
      %32 = sbr.rel (0) target = $region9
    $region8: #{dot_product_attention.3} parent=1 // pred_region
      %s34 = ssub.s32 256, 256
      %35 = vsyncadd [#allocation8], %s34
      %s36 = sshll.u32 [#allocation7], 4
      %s37 = int_to_ptr.vmem [resolvable:$true] %s36
      %42 = dma.hbm_to_vmem [thread:$0]  %s1, 256, %s37, [#allocation8], 64, 64, 4
    $region9: #{dot_product_attention.3} parent=1 // pred_fallthru
      _
    // Predicated region
    $region10: #{dot_product_attention.3} parent=1 // pred_check
      _
    $region11: #{dot_product_attention.3} parent=1 // pred_check_branch
      %44 = sbr.rel (0) target = $region13
    $region12: #{dot_product_attention.3} parent=1 // pred_region
      %s46 = ssub.s32 256, 256
      %47 = vsyncadd [#allocation8], %s46
      %s48 = sshll.u32 [#allocation9], 4
      %s49 = int_to_ptr.vmem [resolvable:$true] %s48
      %54 = dma.hbm_to_vmem [thread:$0]  %s2, 256, %s49, [#allocation8], 64, 64, 4
    $region13: #{dot_product_attention.3} parent=1 // pred_fallthru
      _
    // Predicated region
    $region14: #{dot_product_attention.3} parent=1 // pred_check
      _
    $region15: #{dot_product_attention.3} parent=1 // pred_check_branch
      %56 = sbr.rel (0) target = $region17
    $region16: #{dot_product_attention.3} parent=1 // pred_region
      _
    $region17: #{dot_product_attention.3} parent=1 // pred_fallthru
      _
    // Predicated region
    $region18: #{dot_product_attention.3} parent=1 // pred_check
      _
    $region19: #{dot_product_attention.3} parent=1 // pred_check_branch
      %58 = sbr.rel (0) target = $region21
    $region20: #{dot_product_attention.3} parent=1 // pred_region
      %s60 = ssub.s32 16, 16
      %61 = vsyncadd [#allocation11], %s60
      %s63 = sshll.u32 [#allocation10], 4
      %s64 = int_to_ptr.vmem [resolvable:$true] %s63
      %66 = dma.hbm_to_vmem [thread:$0]  %s4, 16, %s64, [#allocation11]
    $region21: #{dot_product_attention.3} parent=1 // pred_fallthru
      _
    // Predicated region
    $region22: #{dot_product_attention.3} parent=1 // pred_check
      _
    $region23: #{dot_product_attention.3} parent=1 // pred_check_branch
      %68 = sbr.rel (0) target = $region25
    $region24: #{dot_product_attention.3} parent=1 // pred_region
      %s70 = ssub.s32 16, 16
      %71 = vsyncadd [#allocation11], %s70
      %s73 = sshll.u32 [#allocation12], 4
      %s74 = int_to_ptr.vmem [resolvable:$true] %s73
      %76 = dma.hbm_to_vmem [thread:$0]  %s5, 16, %s74, [#allocation11]
    $region25: #{dot_product_attention.3} parent=1 // pred_fallthru
      _
    // Predicated region
    $region26: #{dot_product_attention.3} parent=1 // pred_check
      _
    $region27: #{dot_product_attention.3} parent=1 // pred_check_branch
      %78 = sbr.rel (0) target = $region29
    $region28: #{dot_product_attention.3} parent=1 // pred_region
      %s80 = ssub.s32 16, 16
      %81 = vsyncadd [#allocation14], %s80
      %s83 = sshll.u32 [#allocation13], 4
      %s84 = int_to_ptr.vmem [resolvable:$true] %s83
      %86 = dma.hbm_to_vmem [thread:$0]  %s6, 16, %s84, [#allocation14]
    $region29: #{dot_product_attention.3} parent=1 // pred_fallthru
      _
    // Predicated region
    $region30: #{dot_product_attention.3} parent=1 // pred_check
      _
    $region31: #{dot_product_attention.3} parent=1 // pred_check_branch
      %88 = sbr.rel (0) target = $region33
    $region32: #{dot_product_attention.3} parent=1 // pred_region
      %89 = dma.done [#allocation6], 256
    $region33: #{dot_product_attention.3} parent=1 // pred_fallthru
      _
    // Predicated region
    $region34: #{dot_product_attention.3} parent=1 // pred_check
      _
    $region35: #{dot_product_attention.3} parent=1 // pred_check_branch
      %91 = sbr.rel (0) target = $region37
    $region36: #{dot_product_attention.3} parent=1 // pred_region
      %92 = dma.done [#allocation8], 256
    $region37: #{dot_product_attention.3} parent=1 // pred_fallthru
      _
    // Predicated region
    $region38: #{dot_product_attention.3} parent=1 // pred_check
      _
    $region39: #{dot_product_attention.3} parent=1 // pred_check_branch
      %94 = sbr.rel (0) target = $region41
    $region40: #{dot_product_attention.3} parent=1 // pred_region
      %95 = dma.done [#allocation8], 256
    $region41: #{dot_product_attention.3} parent=1 // pred_fallthru
      _
    // Predicated region
    $region42: #{dot_product_attention.3} parent=1 // pred_check
      _
    $region43: #{dot_product_attention.3} parent=1 // pred_check_branch
      %97 = sbr.rel (0) target = $region45
    $region44: #{dot_product_attention.3} parent=1 // pred_region
      %98 = dma.done [#allocation11], 16
    $region45: #{dot_product_attention.3} parent=1 // pred_fallthru
      _
    // Predicated region
    $region46: #{dot_product_attention.3} parent=1 // pred_check
      _
    $region47: #{dot_product_attention.3} parent=1 // pred_check_branch
      %100 = sbr.rel (0) target = $region49
    $region48: #{dot_product_attention.3} parent=1 // pred_region
      %101 = dma.done [#allocation11], 16
    $region49: #{dot_product_attention.3} parent=1 // pred_fallthru
      _
    // Predicated region
    $region50: #{dot_product_attention.3} parent=1 // pred_check
      _
    $region51: #{dot_product_attention.3} parent=1 // pred_check_branch
      %103 = sbr.rel (0) target = $region53
    $region52: #{dot_product_attention.3} parent=1 // pred_region
      %104 = dma.done [#allocation14], 16
    $region53: #{dot_product_attention.3} parent=1 // pred_fallthru
      _
    %p106 = scmp.eq.s32.totalorder 0, 0
    // Predicated region
    $region54: #{dot_product_attention.3} parent=1 // pred_check
      %p107 = pneg %p106
    $region55: #{dot_product_attention.3} parent=1 // pred_check_branch
      %109 = sbr.rel (%p107) target = $region57
    $region56: #{dot_product_attention.3} parent=1 // pred_region
      %vm110 = vcmask 261120
      %111 = vst.msk [vmem:[#allocation2] sm:$0xff] %vm110, 0.0
      %112 = vst.msk [vmem:[#allocation2 + $0x8] sm:$0xff] %vm110, 0.0
      %113 = vst.msk [vmem:[#allocation3] sm:$0xff] %vm110, 0.0
      %114 = vst.msk [vmem:[#allocation3 + $0x8] sm:$0xff] %vm110, 0.0
      %115 = vst.msk [vmem:[#allocation4] sm:$0xff] %vm110, 0.0
      %116 = vst.msk [vmem:[#allocation4 + $0x8] sm:$0xff] %vm110, 0.0
    $region57: #{dot_product_attention.3} parent=1 // pred_fallthru
      _
    %v117 = vld [vmem:[#allocation5] sm:$0xff]
    %v118 = vld [vmem:[#allocation5 + $0x8] sm:$0xff]
    %v119 = vpack.c.bf16 %v118, %v117
    %v120 = vld [vmem:[#allocation2] sm:$0xff]
    %v121 = vld [vmem:[#allocation2 + $0x8] sm:$0xff]
    %v122 = vld [vmem:[#allocation7] sm:$0xf]
    %v123 = vld [vmem:[#allocation7 + $0x4] sm:$0xf]
    %v124 = vld [vmem:[#allocation7 + $0x8] sm:$0xf]
    %v125 = vld [vmem:[#allocation7 + $0xc] sm:$0xf]
    %v130 = vunpack.c.l.b16 %v122
    %v131 = vunpack.c.l.b16 %v123
    %v132 = vunpack.c.l.b16 %v124
    %v133 = vunpack.c.l.b16 %v125
    %v134 = vpack.c.b16 %v131, %v130
    %v135 = vpack.c.b16 %v133, %v132
    %vm138 = vcmask 261120
    %v140 = vsel %vm138, %v119, 0
    %142 = vmatprep.subr.bf16.mxu0 0
    %143 = vmatpush1.bf16.msra.mxu0 0
    %144 = vmatprep.subr.bf16.mxu0 0
    %145 = vmatpush1.bf16.msra.mxu0 0
    %146 = vmatprep.subr.bf16.mxu0 0
    %147 = vmatpush1.bf16.msra.mxu0 0
    %148 = vmatprep.subr.bf16.mxu0 0
    %149 = vmatpush1.bf16.msra.mxu0 0
    %150 = vmatprep.subr.bf16.mxu0 0
    %151 = vmatpush1.bf16.msra.mxu0 0
    %152 = vmatprep.subr.bf16.mxu0 0
    %153 = vmatpush1.bf16.msra.mxu0 0
    %154 = vmatprep.subr.bf16.mxu0 0
    %155 = vmatpush1.bf16.msra.mxu0 %v135
    %156 = vmatprep.subr.bf16.mxu0 0
    %157 = vmatpush1.bf16.msra.mxu0 %v134
    %158 = vmatprep.subr.bf16.mxu0 0
    %159 = vmatpush2.bf16.msra.mxu0 0
    %160 = vmatprep.subr.bf16.mxu0 0
    %161 = vmatpush2.bf16.msra.mxu0 0
    %162 = vmatprep.subr.bf16.mxu0 0
    %163 = vmatpush2.bf16.msra.mxu0 0
    %164 = vmatprep.subr.bf16.mxu0 0
    %165 = vmatpush2.bf16.msra.mxu0 0
    %166 = vmatprep.subr.bf16.mxu0 0
    %167 = vmatpush2.bf16.msra.mxu0 0
    %168 = vmatprep.subr.bf16.mxu0 0
    %169 = vmatpush2.bf16.msra.mxu0 0
    %170 = vmatprep.subr.bf16.mxu0 0
    %171 = vmatpush2.bf16.msra.mxu0 0
    %172 = vmatprep.subr.bf16.mxu0 0
    %173 = vmatpush2.bf16.msra.mxu0 0
    %174 = vmatprep.mubr.bf16.mxu0 0
    %175 = vmatmul.mubr.bf16.gmra.mxu0 %v140
    %v176 = vpop.f32.mrf.mxu0
    %v177 = vadd.f32 0.0, %v176
    %v178 = vpop.f32.mrf.mxu0
    %v179 = vpop.f32.mrf.mxu0
    %v180 = vadd.f32 0.0, %v179
    %v181 = vpop.f32.mrf.mxu0
    %182 = vdwg.mxu0
    %v183 = vadd.f32 %v120, %v177
    %v184 = vadd.f32 %v121, %v180
    %185 = vst.msk [vmem:[#allocation2] sm:$0xff] %vm138, %v183
    %186 = vst.msk [vmem:[#allocation2 + $0x8] sm:$0xff] %vm138, %v184
    %v187 = vld [vmem:[#allocation3] sm:$0xff]
    %v188 = vld [vmem:[#allocation3 + $0x8] sm:$0xff]
    %v189 = vld [vmem:[#allocation9] sm:$0xf]
    %v190 = vld [vmem:[#allocation9 + $0x4] sm:$0xf]
    %v191 = vld [vmem:[#allocation9 + $0x8] sm:$0xf]
    %v192 = vld [vmem:[#allocation9 + $0xc] sm:$0xf]
    %v197 = vunpack.c.l.b16 %v189
    %v198 = vunpack.c.l.b16 %v190
    %v199 = vunpack.c.l.b16 %v191
    %v200 = vunpack.c.l.b16 %v192
    %v201 = vpack.c.b16 %v198, %v197
    %v202 = vpack.c.b16 %v200, %v199
    %205 = vmatprep.subr.bf16.mxu0 0
    %206 = vmatpush1.bf16.msra.mxu0 0
    %207 = vmatprep.subr.bf16.mxu0 0
    %208 = vmatpush1.bf16.msra.mxu0 0
    %209 = vmatprep.subr.bf16.mxu0 0
    %210 = vmatpush1.bf16.msra.mxu0 0
    %211 = vmatprep.subr.bf16.mxu0 0
    %212 = vmatpush1.bf16.msra.mxu0 0
    %213 = vmatprep.subr.bf16.mxu0 0
    %214 = vmatpush1.bf16.msra.mxu0 0
    %215 = vmatprep.subr.bf16.mxu0 0
    %216 = vmatpush1.bf16.msra.mxu0 0
    %217 = vmatprep.subr.bf16.mxu0 0
    %218 = vmatpush1.bf16.msra.mxu0 %v202
    %219 = vmatprep.subr.bf16.mxu0 0
    %220 = vmatpush1.bf16.msra.mxu0 %v201
    %221 = vmatprep.subr.bf16.mxu0 0
    %222 = vmatpush2.bf16.msra.mxu0 0
    %223 = vmatprep.subr.bf16.mxu0 0
    %224 = vmatpush2.bf16.msra.mxu0 0
    %225 = vmatprep.subr.bf16.mxu0 0
    %226 = vmatpush2.bf16.msra.mxu0 0
    %227 = vmatprep.subr.bf16.mxu0 0
    %228 = vmatpush2.bf16.msra.mxu0 0
    %229 = vmatprep.subr.bf16.mxu0 0
    %230 = vmatpush2.bf16.msra.mxu0 0
    %231 = vmatprep.subr.bf16.mxu0 0
    %232 = vmatpush2.bf16.msra.mxu0 0
    %233 = vmatprep.subr.bf16.mxu0 0
    %234 = vmatpush2.bf16.msra.mxu0 0
    %235 = vmatprep.subr.bf16.mxu0 0
    %236 = vmatpush2.bf16.msra.mxu0 0
    %237 = vmatprep.mubr.bf16.mxu0 0
    %238 = vmatmul.mubr.bf16.gmra.mxu0 %v140
    %v239 = vpop.f32.mrf.mxu0
    %v240 = vadd.f32 0.0, %v239
    %v241 = vpop.f32.mrf.mxu0
    %v242 = vpop.f32.mrf.mxu0
    %v243 = vadd.f32 0.0, %v242
    %v244 = vpop.f32.mrf.mxu0
    %245 = vdwg.mxu0
    %v246 = vadd.f32 %v187, %v240
    %v247 = vadd.f32 %v188, %v243
    %248 = vst.msk [vmem:[#allocation3] sm:$0xff] %vm138, %v246
    %249 = vst.msk [vmem:[#allocation3 + $0x8] sm:$0xff] %vm138, %v247
    %v250 = vld [vmem:[#allocation4] sm:$0xff]
    %v251 = vld [vmem:[#allocation4 + $0x8] sm:$0xff]
    %v252 = vld [vmem:[%s3] sm:$0xf]
    %v253 = vld [vmem:[%s3 + $0x4] sm:$0xf]
    %v254 = vld [vmem:[%s3 + $0x8] sm:$0xf]
    %v255 = vld [vmem:[%s3 + $0xc] sm:$0xf]
    %v260 = vunpack.c.l.b16 %v252
    %v261 = vunpack.c.l.b16 %v253
    %v262 = vunpack.c.l.b16 %v254
    %v263 = vunpack.c.l.b16 %v255
    %v264 = vpack.c.b16 %v261, %v260
    %v265 = vpack.c.b16 %v263, %v262
    %268 = vmatprep.subr.bf16.mxu0 0
    %269 = vmatpush1.bf16.msra.mxu0 0
    %270 = vmatprep.subr.bf16.mxu0 0
    %271 = vmatpush1.bf16.msra.mxu0 0
    %272 = vmatprep.subr.bf16.mxu0 0
    %273 = vmatpush1.bf16.msra.mxu0 0
    %274 = vmatprep.subr.bf16.mxu0 0
    %275 = vmatpush1.bf16.msra.mxu0 0
    %276 = vmatprep.subr.bf16.mxu0 0
    %277 = vmatpush1.bf16.msra.mxu0 0
    %278 = vmatprep.subr.bf16.mxu0 0
    %279 = vmatpush1.bf16.msra.mxu0 0
    %280 = vmatprep.subr.bf16.mxu0 0
    %281 = vmatpush1.bf16.msra.mxu0 %v265
    %282 = vmatprep.subr.bf16.mxu0 0
    %283 = vmatpush1.bf16.msra.mxu0 %v264
    %284 = vmatprep.subr.bf16.mxu0 0
    %285 = vmatpush2.bf16.msra.mxu0 0
    %286 = vmatprep.subr.bf16.mxu0 0
    %287 = vmatpush2.bf16.msra.mxu0 0
    %288 = vmatprep.subr.bf16.mxu0 0
    %289 = vmatpush2.bf16.msra.mxu0 0
    %290 = vmatprep.subr.bf16.mxu0 0
    %291 = vmatpush2.bf16.msra.mxu0 0
    %292 = vmatprep.subr.bf16.mxu0 0
    %293 = vmatpush2.bf16.msra.mxu0 0
    %294 = vmatprep.subr.bf16.mxu0 0
    %295 = vmatpush2.bf16.msra.mxu0 0
    %296 = vmatprep.subr.bf16.mxu0 0
    %297 = vmatpush2.bf16.msra.mxu0 0
    %298 = vmatprep.subr.bf16.mxu0 0
    %299 = vmatpush2.bf16.msra.mxu0 0
    %300 = vmatprep.mubr.bf16.mxu0 0
    %301 = vmatmul.mubr.bf16.gmra.mxu0 %v140
    %v302 = vpop.f32.mrf.mxu0
    %v303 = vadd.f32 0.0, %v302
    %v304 = vpop.f32.mrf.mxu0
    %v305 = vpop.f32.mrf.mxu0
    %v306 = vadd.f32 0.0, %v305
    %v307 = vpop.f32.mrf.mxu0
    %308 = vdwg.mxu0
    %v309 = vadd.f32 %v250, %v303
    %v310 = vadd.f32 %v251, %v306
    %311 = vst.msk [vmem:[#allocation4] sm:$0xff] %vm138, %v309
    %312 = vst.msk [vmem:[#allocation4 + $0x8] sm:$0xff] %vm138, %v310
    // Predicated region
    $region58: #{dot_product_attention.3} parent=1 // pred_check
      %p313 = pneg %p106
    $region59: #{dot_product_attention.3} parent=1 // pred_check_branch
      %315 = sbr.rel (%p313) target = $region61
    $region60: #{dot_product_attention.3} parent=1 // pred_region
      %v316 = vld [vmem:[#allocation2] sm:$0xff]
      %v317 = vld [vmem:[#allocation2 + $0x8] sm:$0xff]
      %v318 = vld [vmem:[#allocation10] sm:$0x1]
      %v320 = vlaneseq
      %v321 = vshrl.u32 %v320, 7
      %v322 = vsub.s32 0, %v321
      %v323 = vrot.slane %v318, %v322
      %v325 = vadd.f32 %v316, %v323
      %v326 = vadd.f32 %v317, %v323
      %v327 = vpack.c.bf16 %v326, %v325
      %v329 = vunpack.c.l.b16 %v327
      %v330 = vunpack.c.h.b16 %v327
      %v331 = vpack.c.b16 %v329, %v329
      %v332 = vpack.c.b16 %v330, %v330
      %vm335 = vcmask 257024
      %336 = vst.msk [vmem:[%s7] sm:$0xf] %vm335, %v331
      %337 = vst.msk [vmem:[%s7 + $0x4] sm:$0xf] %vm335, %v332
      %v338 = vld [vmem:[#allocation3] sm:$0xff]
      %v339 = vld [vmem:[#allocation3 + $0x8] sm:$0xff]
      %v340 = vld [vmem:[#allocation12] sm:$0x1]
      %v342 = vlaneseq
      %v343 = vshrl.u32 %v342, 7
      %v344 = vsub.s32 0, %v343
      %v345 = vrot.slane %v340, %v344
      %v347 = vadd.f32 %v338, %v345
      %v348 = vadd.f32 %v339, %v345
      %v349 = vpack.c.bf16 %v348, %v347
      %v351 = vunpack.c.l.b16 %v349
      %v352 = vunpack.c.h.b16 %v349
      %v353 = vpack.c.b16 %v351, %v351
      %v354 = vpack.c.b16 %v352, %v352
      %357 = vst.msk [vmem:[%s8] sm:$0xf] %vm335, %v353
      %358 = vst.msk [vmem:[%s8 + $0x4] sm:$0xf] %vm335, %v354
      %v359 = vld [vmem:[#allocation4] sm:$0xff]
      %v360 = vld [vmem:[#allocation4 + $0x8] sm:$0xff]
      %v361 = vld [vmem:[#allocation13] sm:$0x1]
      %v363 = vlaneseq
      %v364 = vshrl.u32 %v363, 7
      %v365 = vsub.s32 0, %v364
      %v366 = vrot.slane %v361, %v365
      %v368 = vadd.f32 %v359, %v366
      %v369 = vadd.f32 %v360, %v366
      %v370 = vpack.c.bf16 %v369, %v368
      %v372 = vunpack.c.l.b16 %v370
      %v373 = vunpack.c.h.b16 %v370
      %v374 = vpack.c.b16 %v372, %v372
      %v375 = vpack.c.b16 %v373, %v373
      %378 = vst.msk [vmem:[%s9] sm:$0xf] %vm335, %v374
      %379 = vst.msk [vmem:[%s9 + $0x4] sm:$0xf] %vm335, %v375
    $region61: #{dot_product_attention.3} parent=1 // pred_fallthru
      _
    // Predicated region
    $region62: #{dot_product_attention.3} parent=1 // pred_check
      _
    $region63: #{dot_product_attention.3} parent=1 // pred_check_branch
      %381 = sbr.rel (0) target = $region65
    $region64: #{dot_product_attention.3} parent=1 // pred_region
      _
    $region65: #{dot_product_attention.3} parent=1 // pred_fallthru
      _
    // Predicated region
    $region66: #{dot_product_attention.3} parent=1 // pred_check
      _
    $region67: #{dot_product_attention.3} parent=1 // pred_check_branch
      %383 = sbr.rel (0) target = $region69
    $region68: #{dot_product_attention.3} parent=1 // pred_region
      _
    $region69: #{dot_product_attention.3} parent=1 // pred_fallthru
      _
    // Predicated region
    $region70: #{dot_product_attention.3} parent=1 // pred_check
      _
    $region71: #{dot_product_attention.3} parent=1 // pred_check_branch
      %385 = sbr.rel (0) target = $region73
    $region72: #{dot_product_attention.3} parent=1 // pred_region
      _
    $region73: #{dot_product_attention.3} parent=1 // pred_fallthru
      _
    // Predicated region
    $region74: #{dot_product_attention.3} parent=1 // pred_check
      _
    $region75: #{dot_product_attention.3} parent=1 // pred_check_branch
      %387 = sbr.rel (0) target = $region77
    $region76: #{dot_product_attention.3} parent=1 // pred_region
      _
    $region77: #{dot_product_attention.3} parent=1 // pred_fallthru
      _
    // Predicated region
    $region78: #{dot_product_attention.3} parent=1 // pred_check
      _
    $region79: #{dot_product_attention.3} parent=1 // pred_check_branch
      %389 = sbr.rel (0) target = $region81
    $region80: #{dot_product_attention.3} parent=1 // pred_region
      _
    $region81: #{dot_product_attention.3} parent=1 // pred_fallthru
      _
    // Predicated region
    $region82: #{dot_product_attention.3} parent=1 // pred_check
      _
    $region83: #{dot_product_attention.3} parent=1 // pred_check_branch
      %391 = sbr.rel (0) target = $region85
    $region84: #{dot_product_attention.3} parent=1 // pred_region
      _
    $region85: #{dot_product_attention.3} parent=1 // pred_fallthru
      _
    %392 = vsyncpa [#allocation6], 1
    %393 = vsyncpa [#allocation8], 1
    %394 = vsyncpa [#allocation11], 1
    %395 = vsyncpa [#allocation14], 1

// kernel: dot_product_attention.4
$region0: #{dot_product_attention.4}
  #allocation0 [shape = 'u32[]', space=smem, size = 0x4, offset = 0x4, fixed_abs, tag = 'smem constant byte address 0x4 - core index']
  #allocation1 [shape = 'u32[144,128]{1,0:T(1,128)}', space=vmem, size = 0x12000, scoped, tag = 'internal scratch']
  #allocation2 [shape = 'f32[8,4]{1,0:T(8,128)}', space=vmem, size = 0x1000, scoped, tag = 'scratch operand']
  #allocation3 [shape = 'f32[8,4]{1,0:T(8,128)}', space=vmem, size = 0x1000, scoped, tag = 'scratch operand']
  #allocation4 [shape = 'f32[4,8,8]{2,1,0:T(8,128)}', space=vmem, size = 0x4000, scoped, tag = 'scratch operand']
  %s0 = inlined_call_operand.vmem [shape: bf16[2,8,32], index: 0, kind: input, shape index: {}]
  %s1 = inlined_call_operand.vmem [shape: bf16[2,8,32], index: 1, kind: input, shape index: {}]
  %s2 = inlined_call_operand.vmem [shape: bf16[2,8,32], index: 2, kind: input, shape index: {}]
  %s3 = inlined_call_operand.vmem [shape: bf16[2,8,32], index: 3, kind: output, shape index: {}]
  %s4 = sld [smem:[#allocation0]]
  $region53: #{dot_product_attention.4} parent=0
    _
  %s6 = ssub.s32 1, %s4
  %s7 = scalar_select 0, %s6, %s4
  loop: start=0, step=1, limit=4
  $region2: #{dot_product_attention.4} parent=0 // loop_pre_header
    _
  $region3: #{dot_product_attention.4} parent=0 // loop_header
    %s9 = sphi 0, %s13
    %p10 = scmp.ge.s32.totalorder %s9, 4
    %s16 = sphi 0, %s35
    %s17 = sphi 0, %s31
    %s18 = sphi 0, %s27
    %s19 = sphi 0, %s16
    %s20 = sphi 0, %s17
    %s21 = sphi 0, %s18
    %s22 = sphi 0, %s19
    %s23 = sphi 0, %s20
    %s24 = sphi 0, %s21
    %s40 = sphi 0, %s42
    %s43 = sphi 0, %s40
    %s44 = sphi 0, %s43
    %s60 = sphi 0, %s44
    %s68 = sphi 0, %s70
    %s71 = sphi 0, %s68
    %s72 = sphi 0, %s71
    %s88 = sphi 0, %s72
    %s96 = sphi 0, %s98
    %s99 = sphi 0, %s96
    %s100 = sphi 0, %s99
    %s116 = sphi 0, %s100
    %s124 = sphi 0, %s126
    %s127 = sphi 0, %s124
    %s128 = sphi 0, %s127
    %s144 = sphi 0, %s128
  $region4: #{dot_product_attention.4} parent=0 // loop_header_branch
    %12 = sbr.rel (%p10) target = $region8
  $region5: #{dot_product_attention.4} parent=0 // loop_body
    %s14 = ssub.s32 %s9, 1
    %s15 = ssub.s32 %s9, 2
    %s25 = sadd.s32 1, %s18
    %p26 = scmp.ge.s32.totalorder %s25, 1
    %s27 = scalar_select %p26, 0, %s25
    %s28 = sadd.s32 1, %s17
    %s29 = scalar_select %p26, %s28, %s17
    %p30 = scmp.ge.s32.totalorder %s29, 1
    %s31 = scalar_select %p30, 0, %s29
    %s32 = sadd.s32 1, %s16
    %s33 = scalar_select %p30, %s32, %s16
    %p34 = scmp.ge.s32.totalorder %s33, 2
    %s35 = scalar_select %p34, 0, %s33
    %s36 = ssub.s32 %s16, %s35
    %s37 = ssub.s32 %s17, %s31
    %s38 = sor.u32 %s36, %s37
    %p39 = scmp.eq.s32.totalorder %s38, 0
    %s41 = sadd.s32 %s40, 1
    %s42 = scalar_select %p39, %s40, %s41
    %p45 = pneg %p39
    %p46 = scmp.eq.s32.totalorder %s9, 1
    %p47 = por %p45, %p46
    %p48 = scmp.ne.s32.totalorder %s40, %s43
    %p49 = scmp.eq.s32.totalorder %s9, 0
    %p50 = por %p48, %p49
    %p51 = scmp.ne.s32.totalorder %s40, %s43
    %p52 = scmp.eq.s32.totalorder %s14, 1
    %p53 = por %p51, %p52
    %p54 = scmp.ne.s32.totalorder %s43, %s44
    %p55 = scmp.eq.s32.totalorder %s14, 0
    %p56 = por %p54, %p55
    %p57 = scmp.ne.s32.totalorder %s43, %s44
    %p58 = scmp.eq.s32.totalorder %s15, 1
    %p59 = por %p57, %p58
    %p61 = scmp.ne.s32.totalorder %s44, %s60
    %p62 = scmp.eq.s32.totalorder %s15, 0
    %p63 = por %p61, %p62
    %s64 = ssub.s32 %s16, %s35
    %s65 = ssub.s32 %s18, %s27
    %s66 = sor.u32 %s64, %s65
    %p67 = scmp.eq.s32.totalorder %s66, 0
    %s69 = sadd.s32 %s68, 1
    %s70 = scalar_select %p67, %s68, %s69
    %p73 = pneg %p67
    %p74 = scmp.eq.s32.totalorder %s9, 1
    %p75 = por %p73, %p74
    %p76 = scmp.ne.s32.totalorder %s68, %s71
    %p77 = scmp.eq.s32.totalorder %s9, 0
    %p78 = por %p76, %p77
    %p79 = scmp.ne.s32.totalorder %s68, %s71
    %p80 = scmp.eq.s32.totalorder %s14, 1
    %p81 = por %p79, %p80
    %p82 = scmp.ne.s32.totalorder %s71, %s72
    %p83 = scmp.eq.s32.totalorder %s14, 0
    %p84 = por %p82, %p83
    %p85 = scmp.ne.s32.totalorder %s71, %s72
    %p86 = scmp.eq.s32.totalorder %s15, 1
    %p87 = por %p85, %p86
    %p89 = scmp.ne.s32.totalorder %s72, %s88
    %p90 = scmp.eq.s32.totalorder %s15, 0
    %p91 = por %p89, %p90
    %s92 = ssub.s32 %s16, %s35
    %s93 = ssub.s32 %s18, %s27
    %s94 = sor.u32 %s92, %s93
    %p95 = scmp.eq.s32.totalorder %s94, 0
    %s97 = sadd.s32 %s96, 1
    %s98 = scalar_select %p95, %s96, %s97
    %p101 = pneg %p95
    %p102 = scmp.eq.s32.totalorder %s9, 1
    %p103 = por %p101, %p102
    %p104 = scmp.ne.s32.totalorder %s96, %s99
    %p105 = scmp.eq.s32.totalorder %s9, 0
    %p106 = por %p104, %p105
    %p107 = scmp.ne.s32.totalorder %s96, %s99
    %p108 = scmp.eq.s32.totalorder %s14, 1
    %p109 = por %p107, %p108
    %p110 = scmp.ne.s32.totalorder %s99, %s100
    %p111 = scmp.eq.s32.totalorder %s14, 0
    %p112 = por %p110, %p111
    %p113 = scmp.ne.s32.totalorder %s99, %s100
    %p114 = scmp.eq.s32.totalorder %s15, 1
    %p115 = por %p113, %p114
    %p117 = scmp.ne.s32.totalorder %s100, %s116
    %p118 = scmp.eq.s32.totalorder %s15, 0
    %p119 = por %p117, %p118
    %s120 = ssub.s32 %s16, %s35
    %s121 = ssub.s32 %s17, %s31
    %s122 = sor.u32 %s120, %s121
    %p123 = scmp.eq.s32.totalorder %s122, 0
    %s125 = sadd.s32 %s124, 1
    %s126 = scalar_select %p123, %s124, %s125
    %p129 = pneg %p123
    %p130 = scmp.eq.s32.totalorder %s9, 1
    %p131 = por %p129, %p130
    %p132 = scmp.ne.s32.totalorder %s124, %s127
    %p133 = scmp.eq.s32.totalorder %s9, 0
    %p134 = por %p132, %p133
    %p135 = scmp.ne.s32.totalorder %s124, %s127
    %p136 = scmp.eq.s32.totalorder %s14, 1
    %p137 = por %p135, %p136
    %p138 = scmp.ne.s32.totalorder %s127, %s128
    %p139 = scmp.eq.s32.totalorder %s14, 0
    %p140 = por %p138, %p139
    %p141 = scmp.ne.s32.totalorder %s127, %s128
    %p142 = scmp.eq.s32.totalorder %s15, 1
    %p143 = por %p141, %p142
    %p145 = scmp.ne.s32.totalorder %s128, %s144
    %p146 = scmp.eq.s32.totalorder %s15, 0
    %p147 = por %p145, %p146
    %p148 = scmp.le.s32.totalorder 1, %s9
    %p149 = scmp.lt.s32.totalorder %s9, 3
    %p150 = pnand %p148, %p149
    %p151 = pneg %p150
    // Predicated region
    $region9: #{dot_product_attention.4} parent=5 // pred_check
      _
    $region10: #{dot_product_attention.4} parent=5 // pred_check_branch
      %153 = sbr.rel (%p150) target = $region12
    $region11: #{dot_product_attention.4} parent=5 // pred_region
      %s154 = ssub.s32 %s9, 1
    $region12: #{dot_product_attention.4} parent=5 // pred_fallthru
      _
    %p155 = scmp.lt.s32.totalorder %s9, 2
    // Predicated region
    $region13: #{dot_product_attention.4} parent=5 // pred_check
      %p156 = pneg %p155
    $region14: #{dot_product_attention.4} parent=5 // pred_check_branch
      %158 = sbr.rel (%p156) target = $region16
    $region15: #{dot_product_attention.4} parent=5 // pred_region
      // Predicated region
      $region17: #{dot_product_attention.4} parent=15 // pred_check
        %p159 = pneg %p50
      $region18: #{dot_product_attention.4} parent=15 // pred_check_branch
        %161 = sbr.rel (%p159) target = $region20
      $region19: #{dot_product_attention.4} parent=15 // pred_region
        %p162 = scmp.lt.s32.totalorder %s16, 1
        %s163 = scalar_select %p162, %s16, 1
        %p164 = scmp.lt.s32.totalorder %s17, 0
        %s165 = scalar_select %p164, %s17, 0
        %s166 = sadd.s32 %s165, %s163
        %s167 = smul.addr %s166, 4
        %s168 = scalar_lea.vmem %s0, %s167
      $region20: #{dot_product_attention.4} parent=15 // pred_fallthru
        _
      // Predicated region
      $region21: #{dot_product_attention.4} parent=15 // pred_check
        %p169 = pneg %p78
      $region22: #{dot_product_attention.4} parent=15 // pred_check_branch
        %171 = sbr.rel (%p169) target = $region24
      $region23: #{dot_product_attention.4} parent=15 // pred_region
        %p172 = scmp.lt.s32.totalorder %s16, 1
        %s173 = scalar_select %p172, %s16, 1
        %p174 = scmp.lt.s32.totalorder %s18, 0
        %s175 = scalar_select %p174, %s18, 0
        %s176 = sadd.s32 %s175, %s173
        %s177 = smul.addr %s176, 4
        %s178 = scalar_lea.vmem %s1, %s177
      $region24: #{dot_product_attention.4} parent=15 // pred_fallthru
        _
      // Predicated region
      $region25: #{dot_product_attention.4} parent=15 // pred_check
        %p179 = pneg %p106
      $region26: #{dot_product_attention.4} parent=15 // pred_check_branch
        %181 = sbr.rel (%p179) target = $region28
      $region27: #{dot_product_attention.4} parent=15 // pred_region
        %p182 = scmp.lt.s32.totalorder %s16, 1
        %s183 = scalar_select %p182, %s16, 1
        %p184 = scmp.lt.s32.totalorder %s18, 0
        %s185 = scalar_select %p184, %s18, 0
        %s186 = sadd.s32 %s185, %s183
        %s187 = smul.addr %s186, 4
        %s188 = scalar_lea.vmem %s2, %s187
      $region28: #{dot_product_attention.4} parent=15 // pred_fallthru
        _
    $region16: #{dot_product_attention.4} parent=5 // pred_fallthru
      _
    %p189 = scmp.le.s32.totalorder 1, %s9
    %p190 = scmp.lt.s32.totalorder %s9, 3
    %p191 = pnand %p189, %p190
    %p192 = pneg %p191
    // Predicated region
    $region29: #{dot_product_attention.4} parent=5 // pred_check
      _
    $region30: #{dot_product_attention.4} parent=5 // pred_check_branch
      %194 = sbr.rel (%p191) target = $region32
    $region31: #{dot_product_attention.4} parent=5 // pred_region
      %s195 = ssub.s32 %s9, 1
      %p196 = scmp.lt.s32.totalorder %s19, 1
      %s197 = scalar_select %p196, %s19, 1
      %p198 = scmp.lt.s32.totalorder %s20, 0
      %s199 = scalar_select %p198, %s20, 0
      %s200 = sadd.s32 %s199, %s197
      %s201 = smul.addr %s200, 4
      %s202 = scalar_lea.vmem %s0, %s201
      %p203 = pneg %p56
      %p204 = pneg %p53
      %p205 = scmp.lt.s32.totalorder %s19, 1
      %s206 = scalar_select %p205, %s19, 1
      %p207 = scmp.lt.s32.totalorder %s21, 0
      %s208 = scalar_select %p207, %s21, 0
      %s209 = sadd.s32 %s208, %s206
      %s210 = smul.addr %s209, 4
      %s211 = scalar_lea.vmem %s1, %s210
      %p212 = pneg %p84
      %p213 = pneg %p81
      %p214 = scmp.lt.s32.totalorder %s19, 1
      %s215 = scalar_select %p214, %s19, 1
      %p216 = scmp.lt.s32.totalorder %s21, 0
      %s217 = scalar_select %p216, %s21, 0
      %s218 = sadd.s32 %s217, %s215
      %s219 = smul.addr %s218, 4
      %s220 = scalar_lea.vmem %s2, %s219
      %p221 = pneg %p112
      %p222 = pneg %p109
      %p223 = pneg %p140
      %p224 = pneg %p137
      %p225 = scmp.lt.s32.totalorder %s19, 1
      %s226 = scalar_select %p225, %s19, 1
      %p227 = scmp.lt.s32.totalorder %s20, 0
      %s228 = scalar_select %p227, %s20, 0
      %s229 = sadd.s32 %s228, %s226
      %s230 = smul.addr %s229, 4
      %s231 = scalar_lea.vmem %s3, %s230
      %p232 = scmp.lt.s32.totalorder %s19, 1
      %s233 = scalar_select %p232, %s19, 1
      %p234 = scmp.lt.s32.totalorder %s20, 0
      %s235 = scalar_select %p234, %s20, 0
      %s236 = sadd.s32 %s235, %s233
      %s237 = smul.addr %s236, 4
      %s238 = scalar_lea.vmem %s0, %s237
      %p239 = scmp.lt.s32.totalorder %s19, 1
      %s240 = scalar_select %p239, %s19, 1
      %p241 = scmp.lt.s32.totalorder %s21, 0
      %s242 = scalar_select %p241, %s21, 0
      %s243 = sadd.s32 %s242, %s240
      %s244 = smul.addr %s243, 4
      %s245 = scalar_lea.vmem %s1, %s244
      %p246 = scmp.lt.s32.totalorder %s19, 1
      %s247 = scalar_select %p246, %s19, 1
      %p248 = scmp.lt.s32.totalorder %s21, 0
      %s249 = scalar_select %p248, %s21, 0
      %s250 = sadd.s32 %s249, %s247
      %s251 = smul.addr %s250, 4
      %s252 = scalar_lea.vmem %s2, %s251
      %p253 = scmp.lt.s32.totalorder %s19, 1
      %s254 = scalar_select %p253, %s19, 1
      %p255 = scmp.lt.s32.totalorder %s20, 0
      %s256 = scalar_select %p255, %s20, 0
      %s257 = sadd.s32 %s256, %s254
      %s258 = smul.addr %s257, 4
      %s259 = scalar_lea.vmem %s3, %s258
      %p261 = scmp.eq.s32.totalorder %s21, 0
      // Predicated region
      $region33: #{dot_product_attention.4} parent=31 // pred_check
        %p262 = pneg %p261
      $region34: #{dot_product_attention.4} parent=31 // pred_check_branch
        %264 = sbr.rel (%p262) target = $region36
      $region35: #{dot_product_attention.4} parent=31 // pred_region
        %vm265 = vcmask 31744
        %266 = vst.msk [vmem:[#allocation2] sm:$0xff] %vm265, -inf
        %267 = vst.msk [vmem:[#allocation3] sm:$0xff] %vm265, 0.0
        %vm268 = vcmask 64512
        %269 = vst.msk [vmem:[#allocation4] sm:$0xff] %vm268, 0.0
        %270 = vst.msk [vmem:[#allocation4 + $0x8] sm:$0xff] %vm268, 0.0
        %271 = vst.msk [vmem:[#allocation4 + $0x10] sm:$0xff] %vm268, 0.0
        %272 = vst.msk [vmem:[#allocation4 + $0x18] sm:$0xff] %vm268, 0.0
      $region36: #{dot_product_attention.4} parent=31 // pred_fallthru
        _
      %v273 = vld [vmem:[%s238] sm:$0xf]
      %v274 = vld [vmem:[%s245] sm:$0xf]
      %v275 = vld [vmem:[%s252] sm:$0xf]
      %vm276 = vcmask 64512
      %v278 = vsel %vm276, %v273, 0
      %v281 = vsel %vm276, %v274, 0
      %283 = vmatprep.subr.bf16.mxu0 0
      %284 = vmatpush1.bf16.xpose.msra.mxu0 0
      %285 = vmatprep.subr.bf16.mxu0 0
      %286 = vmatpush1.bf16.xpose.msra.mxu0 0
      %287 = vmatprep.subr.bf16.mxu0 0
      %288 = vmatpush1.bf16.xpose.msra.mxu0 0
      %289 = vmatprep.subr.bf16.mxu0 0
      %290 = vmatpush1.bf16.xpose.msra.mxu0 0
      %291 = vmatprep.subr.bf16.mxu0 0
      %292 = vmatpush1.bf16.xpose.msra.mxu0 0
      %293 = vmatprep.subr.bf16.mxu0 0
      %294 = vmatpush1.bf16.xpose.msra.mxu0 0
      %295 = vmatprep.subr.bf16.mxu0 0
      %296 = vmatpush1.bf16.xpose.msra.mxu0 0
      %297 = vmatprep.subr.bf16.mxu0 0
      %298 = vmatpush1.bf16.xpose.msra.mxu0 %v281
      %299 = vmatprep.subr.bf16.mxu0 0
      %300 = vmatpush2.bf16.xpose.msra.mxu0 0
      %301 = vmatprep.subr.bf16.mxu0 0
      %302 = vmatpush2.bf16.xpose.msra.mxu0 0
      %303 = vmatprep.subr.bf16.mxu0 0
      %304 = vmatpush2.bf16.xpose.msra.mxu0 0
      %305 = vmatprep.subr.bf16.mxu0 0
      %306 = vmatpush2.bf16.xpose.msra.mxu0 0
      %307 = vmatprep.subr.bf16.mxu0 0
      %308 = vmatpush2.bf16.xpose.msra.mxu0 0
      %309 = vmatprep.subr.bf16.mxu0 0
      %310 = vmatpush2.bf16.xpose.msra.mxu0 0
      %311 = vmatprep.subr.bf16.mxu0 0
      %312 = vmatpush2.bf16.xpose.msra.mxu0 0
      %313 = vmatprep.subr.bf16.mxu0 0
      %314 = vmatpush2.bf16.xpose.msra.mxu0 0
      %315 = vmatprep.mubr.bf16.mxu0 0
      %316 = vmatmul.mubr.bf16.gmra.mxu0 %v278
      %v317 = vpop.f32.mrf.mxu0
      %v318 = vadd.f32 0.0, %v317
      %v319 = vpop.f32.mrf.mxu0
      %v320 = vpop.f32.mrf.mxu0
      %v321 = vpop.f32.mrf.mxu0
      %322 = vdwg.mxu0
      %v323 = vld [vmem:[#allocation2] sm:$0xff]
      %v324 = vsel %vm276, %v318, -inf
      %325 = vmax.xlane.f32.xlu0 %v324
      %v326 = vpop.xlane.xlu0 %325
      %v327 = vmax.f32 %v323, %v326
      %v328 = vsub.f32 %v323, %v327
      %v329 = vmul.f32 %v328, 1.442695
      %v330 = vpow.pop %v329
      %332 = vset.pattern.permute.xlu0 0
      %333 = vperm.xlu0 %332, %v327
      %v334 = vpop.permute.xlu0 %333
      %v336 = vsub.f32 %v318, %v334
      %v337 = vmul.f32 %v336, 1.442695
      %v338 = vpow.pop %v337
      %v339 = vld [vmem:[#allocation3] sm:$0xff]
      %v340 = vmul.f32 %v330, %v339
      %v341 = vsel %vm276, %v338, 0.0
      %342 = vadd.xlane.f32.xlu0 %v341
      %v343 = vpop.xlane.xlu0 %342
      %v344 = vadd.f32 %v340, %v343
      %vm345 = vcmask 7168
      %346 = vst.msk [vmem:[#allocation3] sm:$0xff] %vm345, %v344
      %v347 = vld [vmem:[#allocation4] sm:$0xff]
      %349 = vset.pattern.permute.xlu0 0
      %350 = vperm.xlu0 %349, %v330
      %v351 = vpop.permute.xlu0 %350
      %v353 = vmul.f32 %v351, %v347
      %v354 = vpack.c.bf16 %v338, %v338
      %v356 = vsel %vm276, %v354, 0
      %vm358 = vcmask 1043456
      %v360 = vsel %vm358, %v275, 0
      %362 = vmatprep.subr.bf16.mxu0 0
      %363 = vmatpush1.bf16.msra.mxu0 0
      %364 = vmatprep.subr.bf16.mxu0 0
      %365 = vmatpush1.bf16.msra.mxu0 0
      %366 = vmatprep.subr.bf16.mxu0 0
      %367 = vmatpush1.bf16.msra.mxu0 0
      %368 = vmatprep.subr.bf16.mxu0 0
      %369 = vmatpush1.bf16.msra.mxu0 0
      %370 = vmatprep.subr.bf16.mxu0 0
      %371 = vmatpush1.bf16.msra.mxu0 0
      %372 = vmatprep.subr.bf16.mxu0 0
      %373 = vmatpush1.bf16.msra.mxu0 0
      %374 = vmatprep.subr.bf16.mxu0 0
      %375 = vmatpush1.bf16.msra.mxu0 0
      %376 = vmatprep.subr.bf16.mxu0 0
      %377 = vmatpush1.bf16.msra.mxu0 %v360
      %378 = vmatprep.subr.bf16.mxu0 0
      %379 = vmatpush2.bf16.msra.mxu0 0
      %380 = vmatprep.subr.bf16.mxu0 0
      %381 = vmatpush2.bf16.msra.mxu0 0
      %382 = vmatprep.subr.bf16.mxu0 0
      %383 = vmatpush2.bf16.msra.mxu0 0
      %384 = vmatprep.subr.bf16.mxu0 0
      %385 = vmatpush2.bf16.msra.mxu0 0
      %386 = vmatprep.subr.bf16.mxu0 0
      %387 = vmatpush2.bf16.msra.mxu0 0
      %388 = vmatprep.subr.bf16.mxu0 0
      %389 = vmatpush2.bf16.msra.mxu0 0
      %390 = vmatprep.subr.bf16.mxu0 0
      %391 = vmatpush2.bf16.msra.mxu0 0
      %392 = vmatprep.subr.bf16.mxu0 0
      %393 = vmatpush2.bf16.msra.mxu0 0
      %394 = vmatprep.mubr.bf16.mxu0 0
      %395 = vmatmul.mubr.bf16.gmra.mxu0 %v356
      %v396 = vpop.f32.mrf.mxu0
      %v397 = vadd.f32 0.0, %v396
      %v398 = vpop.f32.mrf.mxu0
      %v399 = vpop.f32.mrf.mxu0
      %v400 = vpop.f32.mrf.mxu0
      %401 = vdwg.mxu0
      %v402 = vadd.f32 %v353, %v397
      %403 = vst.msk [vmem:[#allocation4] sm:$0xff] %vm276, %v402
      %404 = vst.msk [vmem:[#allocation2] sm:$0xff] %vm345, %v327
      %v405 = vld [vmem:[%s238] sm:$0xf]
      %v406 = vld [vmem:[%s245] sm:$0xf]
      %v407 = vld [vmem:[%s252] sm:$0xf]
      %v409 = vunpack.c.l.b16 %v405
      %v410 = vpack.c.b16 %v409, %v409
      %411 = vrot.lane.b32.xlu0 %v410, 120
      %v412 = vpop.permute.xlu0 %411
      %v414 = vunpack.c.l.b16 %v406
      %v415 = vpack.c.b16 %v414, %v414
      %416 = vrot.lane.b32.xlu0 %v415, 120
      %v417 = vpop.permute.xlu0 %416
      %v419 = vsel %vm276, %v412, 0
      %v422 = vsel %vm276, %v417, 0
      %424 = vmatprep.subr.bf16.mxu0 0
      %425 = vmatpush1.bf16.xpose.msra.mxu0 0
      %426 = vmatprep.subr.bf16.mxu0 0
      %427 = vmatpush1.bf16.xpose.msra.mxu0 0
      %428 = vmatprep.subr.bf16.mxu0 0
      %429 = vmatpush1.bf16.xpose.msra.mxu0 0
      %430 = vmatprep.subr.bf16.mxu0 0
      %431 = vmatpush1.bf16.xpose.msra.mxu0 0
      %432 = vmatprep.subr.bf16.mxu0 0
      %433 = vmatpush1.bf16.xpose.msra.mxu0 0
      %434 = vmatprep.subr.bf16.mxu0 0
      %435 = vmatpush1.bf16.xpose.msra.mxu0 0
      %436 = vmatprep.subr.bf16.mxu0 0
      %437 = vmatpush1.bf16.xpose.msra.mxu0 0
      %438 = vmatprep.subr.bf16.mxu0 0
      %439 = vmatpush1.bf16.xpose.msra.mxu0 %v422
      %440 = vmatprep.subr.bf16.mxu0 0
      %441 = vmatpush2.bf16.xpose.msra.mxu0 0
      %442 = vmatprep.subr.bf16.mxu0 0
      %443 = vmatpush2.bf16.xpose.msra.mxu0 0
      %444 = vmatprep.subr.bf16.mxu0 0
      %445 = vmatpush2.bf16.xpose.msra.mxu0 0
      %446 = vmatprep.subr.bf16.mxu0 0
      %447 = vmatpush2.bf16.xpose.msra.mxu0 0
      %448 = vmatprep.subr.bf16.mxu0 0
      %449 = vmatpush2.bf16.xpose.msra.mxu0 0
      %450 = vmatprep.subr.bf16.mxu0 0
      %451 = vmatpush2.bf16.xpose.msra.mxu0 0
      %452 = vmatprep.subr.bf16.mxu0 0
      %453 = vmatpush2.bf16.xpose.msra.mxu0 0
      %454 = vmatprep.subr.bf16.mxu0 0
      %455 = vmatpush2.bf16.xpose.msra.mxu0 0
      %456 = vmatprep.mubr.bf16.mxu0 0
      %457 = vmatmul.mubr.bf16.gmra.mxu0 %v419
      %v458 = vpop.f32.mrf.mxu0
      %v459 = vadd.f32 0.0, %v458
      %v460 = vpop.f32.mrf.mxu0
      %v461 = vpop.f32.mrf.mxu0
      %v462 = vpop.f32.mrf.mxu0
      %463 = vdwg.mxu0
      %v464 = vld [vmem:[#allocation2] sm:$0xff]
      %v465 = vsel %vm276, %v459, -inf
      %466 = vmax.xlane.f32.xlu0 %v465
      %v467 = vpop.xlane.xlu0 %466
      %v468 = vmax.f32 %v464, %v467
      %v469 = vsub.f32 %v464, %v468
      %v470 = vmul.f32 %v469, 1.442695
      %v471 = vpow.pop %v470
      %473 = vset.pattern.permute.xlu0 1
      %474 = vperm.xlu0 %473, %v468
      %v475 = vpop.permute.xlu0 %474
      %v477 = vsub.f32 %v459, %v475
      %v478 = vmul.f32 %v477, 1.442695
      %v479 = vpow.pop %v478
      %v480 = vld [vmem:[#allocation3] sm:$0xff]
      %v481 = vmul.f32 %v471, %v480
      %v482 = vsel %vm276, %v479, 0.0
      %483 = vadd.xlane.f32.xlu0 %v482
      %v484 = vpop.xlane.xlu0 %483
      %v485 = vadd.f32 %v481, %v484
      %vm486 = vcmask 15368
      %487 = vst.msk [vmem:[#allocation3] sm:$0xff] %vm486, %v485
      %s488 = scalar_lea.vmem [#allocation4], 8
      %v489 = vld [vmem:[%s488] sm:$0xff]
      %491 = vset.pattern.permute.xlu0 1
      %492 = vperm.xlu0 %491, %v471
      %v493 = vpop.permute.xlu0 %492
      %v495 = vmul.f32 %v493, %v489
      %v496 = vpack.c.bf16 %v479, %v479
      %v498 = vunpack.c.l.b16 %v407
      %v499 = vpack.c.b16 %v498, %v498
      %500 = vrot.lane.b32.xlu0 %v499, 120
      %v501 = vpop.permute.xlu0 %500
      %v503 = vsel %vm276, %v496, 0
      %v506 = vsel %vm358, %v501, 0
      %508 = vmatprep.subr.bf16.mxu0 0
      %509 = vmatpush1.bf16.msra.mxu0 0
      %510 = vmatprep.subr.bf16.mxu0 0
      %511 = vmatpush1.bf16.msra.mxu0 0
      %512 = vmatprep.subr.bf16.mxu0 0
      %513 = vmatpush1.bf16.msra.mxu0 0
      %514 = vmatprep.subr.bf16.mxu0 0
      %515 = vmatpush1.bf16.msra.mxu0 0
      %516 = vmatprep.subr.bf16.mxu0 0
      %517 = vmatpush1.bf16.msra.mxu0 0
      %518 = vmatprep.subr.bf16.mxu0 0
      %519 = vmatpush1.bf16.msra.mxu0 0
      %520 = vmatprep.subr.bf16.mxu0 0
      %521 = vmatpush1.bf16.msra.mxu0 0
      %522 = vmatprep.subr.bf16.mxu0 0
      %523 = vmatpush1.bf16.msra.mxu0 %v506
      %524 = vmatprep.subr.bf16.mxu0 0
      %525 = vmatpush2.bf16.msra.mxu0 0
      %526 = vmatprep.subr.bf16.mxu0 0
      %527 = vmatpush2.bf16.msra.mxu0 0
      %528 = vmatprep.subr.bf16.mxu0 0
      %529 = vmatpush2.bf16.msra.mxu0 0
      %530 = vmatprep.subr.bf16.mxu0 0
      %531 = vmatpush2.bf16.msra.mxu0 0
      %532 = vmatprep.subr.bf16.mxu0 0
      %533 = vmatpush2.bf16.msra.mxu0 0
      %534 = vmatprep.subr.bf16.mxu0 0
      %535 = vmatpush2.bf16.msra.mxu0 0
      %536 = vmatprep.subr.bf16.mxu0 0
      %537 = vmatpush2.bf16.msra.mxu0 0
      %538 = vmatprep.subr.bf16.mxu0 0
      %539 = vmatpush2.bf16.msra.mxu0 0
      %540 = vmatprep.mubr.bf16.mxu0 0
      %541 = vmatmul.mubr.bf16.gmra.mxu0 %v503
      %v542 = vpop.f32.mrf.mxu0
      %v543 = vadd.f32 0.0, %v542
      %v544 = vpop.f32.mrf.mxu0
      %v545 = vpop.f32.mrf.mxu0
      %v546 = vpop.f32.mrf.mxu0
      %547 = vdwg.mxu0
      %v548 = vadd.f32 %v495, %v543
      %549 = vst.msk [vmem:[%s488] sm:$0xff] %vm276, %v548
      %550 = vst.msk [vmem:[#allocation2] sm:$0xff] %vm486, %v468
      %v551 = vld [vmem:[%s238] sm:$0xf]
      %v552 = vld [vmem:[%s245] sm:$0xf]
      %v553 = vld [vmem:[%s252] sm:$0xf]
      %v555 = vunpack.c.l.b16 %v551
      %v556 = vpack.c.b16 %v555, %v555
      %557 = vrot.lane.b32.xlu0 %v556, 112
      %v558 = vpop.permute.xlu0 %557
      %v560 = vunpack.c.l.b16 %v552
      %v561 = vpack.c.b16 %v560, %v560
      %562 = vrot.lane.b32.xlu0 %v561, 112
      %v563 = vpop.permute.xlu0 %562
      %v565 = vsel %vm276, %v558, 0
      %v568 = vsel %vm276, %v563, 0
      %570 = vmatprep.subr.bf16.mxu0 0
      %571 = vmatpush1.bf16.xpose.msra.mxu0 0
      %572 = vmatprep.subr.bf16.mxu0 0
      %573 = vmatpush1.bf16.xpose.msra.mxu0 0
      %574 = vmatprep.subr.bf16.mxu0 0
      %575 = vmatpush1.bf16.xpose.msra.mxu0 0
      %576 = vmatprep.subr.bf16.mxu0 0
      %577 = vmatpush1.bf16.xpose.msra.mxu0 0
      %578 = vmatprep.subr.bf16.mxu0 0
      %579 = vmatpush1.bf16.xpose.msra.mxu0 0
      %580 = vmatprep.subr.bf16.mxu0 0
      %581 = vmatpush1.bf16.xpose.msra.mxu0 0
      %582 = vmatprep.subr.bf16.mxu0 0
      %583 = vmatpush1.bf16.xpose.msra.mxu0 0
      %584 = vmatprep.subr.bf16.mxu0 0
      %585 = vmatpush1.bf16.xpose.msra.mxu0 %v568
      %586 = vmatprep.subr.bf16.mxu0 0
      %587 = vmatpush2.bf16.xpose.msra.mxu0 0
      %588 = vmatprep.subr.bf16.mxu0 0
      %589 = vmatpush2.bf16.xpose.msra.mxu0 0
      %590 = vmatprep.subr.bf16.mxu0 0
      %591 = vmatpush2.bf16.xpose.msra.mxu0 0
      %592 = vmatprep.subr.bf16.mxu0 0
      %593 = vmatpush2.bf16.xpose.msra.mxu0 0
      %594 = vmatprep.subr.bf16.mxu0 0
      %595 = vmatpush2.bf16.xpose.msra.mxu0 0
      %596 = vmatprep.subr.bf16.mxu0 0
      %597 = vmatpush2.bf16.xpose.msra.mxu0 0
      %598 = vmatprep.subr.bf16.mxu0 0
      %599 = vmatpush2.bf16.xpose.msra.mxu0 0
      %600 = vmatprep.subr.bf16.mxu0 0
      %601 = vmatpush2.bf16.xpose.msra.mxu0 0
      %602 = vmatprep.mubr.bf16.mxu0 0
      %603 = vmatmul.mubr.bf16.gmra.mxu0 %v565
      %v604 = vpop.f32.mrf.mxu0
      %v605 = vadd.f32 0.0, %v604
      %v606 = vpop.f32.mrf.mxu0
      %v607 = vpop.f32.mrf.mxu0
      %v608 = vpop.f32.mrf.mxu0
      %609 = vdwg.mxu0
      %v610 = vld [vmem:[#allocation2] sm:$0xff]
      %v611 = vsel %vm276, %v605, -inf
      %612 = vmax.xlane.f32.xlu0 %v611
      %v613 = vpop.xlane.xlu0 %612
      %v614 = vmax.f32 %v610, %v613
      %v615 = vsub.f32 %v610, %v614
      %v616 = vmul.f32 %v615, 1.442695
      %v617 = vpow.pop %v616
      %619 = vset.pattern.permute.xlu0 2
      %620 = vperm.xlu0 %619, %v614
      %v621 = vpop.permute.xlu0 %620
      %v623 = vsub.f32 %v605, %v621
      %v624 = vmul.f32 %v623, 1.442695
      %v625 = vpow.pop %v624
      %v626 = vld [vmem:[#allocation3] sm:$0xff]
      %v627 = vmul.f32 %v617, %v626
      %v628 = vsel %vm276, %v625, 0.0
      %629 = vadd.xlane.f32.xlu0 %v628
      %v630 = vpop.xlane.xlu0 %629
      %v631 = vadd.f32 %v627, %v630
      %vm632 = vcmask 23568
      %633 = vst.msk [vmem:[#allocation3] sm:$0xff] %vm632, %v631
      %s634 = scalar_lea.vmem [#allocation4], 16
      %v635 = vld [vmem:[%s634] sm:$0xff]
      %637 = vset.pattern.permute.xlu0 2
      %638 = vperm.xlu0 %637, %v617
      %v639 = vpop.permute.xlu0 %638
      %v641 = vmul.f32 %v639, %v635
      %v642 = vpack.c.bf16 %v625, %v625
      %v644 = vunpack.c.l.b16 %v553
      %v645 = vpack.c.b16 %v644, %v644
      %646 = vrot.lane.b32.xlu0 %v645, 112
      %v647 = vpop.permute.xlu0 %646
      %v649 = vsel %vm276, %v642, 0
      %v652 = vsel %vm358, %v647, 0
      %654 = vmatprep.subr.bf16.mxu0 0
      %655 = vmatpush1.bf16.msra.mxu0 0
      %656 = vmatprep.subr.bf16.mxu0 0
      %657 = vmatpush1.bf16.msra.mxu0 0
      %658 = vmatprep.subr.bf16.mxu0 0
      %659 = vmatpush1.bf16.msra.mxu0 0
      %660 = vmatprep.subr.bf16.mxu0 0
      %661 = vmatpush1.bf16.msra.mxu0 0
      %662 = vmatprep.subr.bf16.mxu0 0
      %663 = vmatpush1.bf16.msra.mxu0 0
      %664 = vmatprep.subr.bf16.mxu0 0
      %665 = vmatpush1.bf16.msra.mxu0 0
      %666 = vmatprep.subr.bf16.mxu0 0
      %667 = vmatpush1.bf16.msra.mxu0 0
      %668 = vmatprep.subr.bf16.mxu0 0
      %669 = vmatpush1.bf16.msra.mxu0 %v652
      %670 = vmatprep.subr.bf16.mxu0 0
      %671 = vmatpush2.bf16.msra.mxu0 0
      %672 = vmatprep.subr.bf16.mxu0 0
      %673 = vmatpush2.bf16.msra.mxu0 0
      %674 = vmatprep.subr.bf16.mxu0 0
      %675 = vmatpush2.bf16.msra.mxu0 0
      %676 = vmatprep.subr.bf16.mxu0 0
      %677 = vmatpush2.bf16.msra.mxu0 0
      %678 = vmatprep.subr.bf16.mxu0 0
      %679 = vmatpush2.bf16.msra.mxu0 0
      %680 = vmatprep.subr.bf16.mxu0 0
      %681 = vmatpush2.bf16.msra.mxu0 0
      %682 = vmatprep.subr.bf16.mxu0 0
      %683 = vmatpush2.bf16.msra.mxu0 0
      %684 = vmatprep.subr.bf16.mxu0 0
      %685 = vmatpush2.bf16.msra.mxu0 0
      %686 = vmatprep.mubr.bf16.mxu0 0
      %687 = vmatmul.mubr.bf16.gmra.mxu0 %v649
      %v688 = vpop.f32.mrf.mxu0
      %v689 = vadd.f32 0.0, %v688
      %v690 = vpop.f32.mrf.mxu0
      %v691 = vpop.f32.mrf.mxu0
      %v692 = vpop.f32.mrf.mxu0
      %693 = vdwg.mxu0
      %v694 = vadd.f32 %v641, %v689
      %695 = vst.msk [vmem:[%s634] sm:$0xff] %vm276, %v694
      %696 = vst.msk [vmem:[#allocation2] sm:$0xff] %vm632, %v614
      %v697 = vld [vmem:[%s238] sm:$0xf]
      %v698 = vld [vmem:[%s245] sm:$0xf]
      %v699 = vld [vmem:[%s252] sm:$0xf]
      %v701 = vunpack.c.l.b16 %v697
      %v702 = vpack.c.b16 %v701, %v701
      %703 = vrot.lane.b32.xlu0 %v702, 104
      %v704 = vpop.permute.xlu0 %703
      %v706 = vunpack.c.l.b16 %v698
      %v707 = vpack.c.b16 %v706, %v706
      %708 = vrot.lane.b32.xlu0 %v707, 104
      %v709 = vpop.permute.xlu0 %708
      %v711 = vsel %vm276, %v704, 0
      %v714 = vsel %vm276, %v709, 0
      %716 = vmatprep.subr.bf16.mxu0 0
      %717 = vmatpush1.bf16.xpose.msra.mxu0 0
      %718 = vmatprep.subr.bf16.mxu0 0
      %719 = vmatpush1.bf16.xpose.msra.mxu0 0
      %720 = vmatprep.subr.bf16.mxu0 0
      %721 = vmatpush1.bf16.xpose.msra.mxu0 0
      %722 = vmatprep.subr.bf16.mxu0 0
      %723 = vmatpush1.bf16.xpose.msra.mxu0 0
      %724 = vmatprep.subr.bf16.mxu0 0
      %725 = vmatpush1.bf16.xpose.msra.mxu0 0
      %726 = vmatprep.subr.bf16.mxu0 0
      %727 = vmatpush1.bf16.xpose.msra.mxu0 0
      %728 = vmatprep.subr.bf16.mxu0 0
      %729 = vmatpush1.bf16.xpose.msra.mxu0 0
      %730 = vmatprep.subr.bf16.mxu0 0
      %731 = vmatpush1.bf16.xpose.msra.mxu0 %v714
      %732 = vmatprep.subr.bf16.mxu0 0
      %733 = vmatpush2.bf16.xpose.msra.mxu0 0
      %734 = vmatprep.subr.bf16.mxu0 0
      %735 = vmatpush2.bf16.xpose.msra.mxu0 0
      %736 = vmatprep.subr.bf16.mxu0 0
      %737 = vmatpush2.bf16.xpose.msra.mxu0 0
      %738 = vmatprep.subr.bf16.mxu0 0
      %739 = vmatpush2.bf16.xpose.msra.mxu0 0
      %740 = vmatprep.subr.bf16.mxu0 0
      %741 = vmatpush2.bf16.xpose.msra.mxu0 0
      %742 = vmatprep.subr.bf16.mxu0 0
      %743 = vmatpush2.bf16.xpose.msra.mxu0 0
      %744 = vmatprep.subr.bf16.mxu0 0
      %745 = vmatpush2.bf16.xpose.msra.mxu0 0
      %746 = vmatprep.subr.bf16.mxu0 0
      %747 = vmatpush2.bf16.xpose.msra.mxu0 0
      %748 = vmatprep.mubr.bf16.mxu0 0
      %749 = vmatmul.mubr.bf16.gmra.mxu0 %v711
      %v750 = vpop.f32.mrf.mxu0
      %v751 = vadd.f32 0.0, %v750
      %v752 = vpop.f32.mrf.mxu0
      %v753 = vpop.f32.mrf.mxu0
      %v754 = vpop.f32.mrf.mxu0
      %755 = vdwg.mxu0
      %v756 = vld [vmem:[#allocation2] sm:$0xff]
      %v757 = vsel %vm276, %v751, -inf
      %758 = vmax.xlane.f32.xlu0 %v757
      %v759 = vpop.xlane.xlu0 %758
      %v760 = vmax.f32 %v756, %v759
      %v761 = vsub.f32 %v756, %v760
      %v762 = vmul.f32 %v761, 1.442695
      %v763 = vpow.pop %v762
      %765 = vset.pattern.permute.xlu0 3
      %766 = vperm.xlu0 %765, %v760
      %v767 = vpop.permute.xlu0 %766
      %v769 = vsub.f32 %v751, %v767
      %v770 = vmul.f32 %v769, 1.442695
      %v771 = vpow.pop %v770
      %v772 = vld [vmem:[#allocation3] sm:$0xff]
      %v773 = vmul.f32 %v763, %v772
      %v774 = vsel %vm276, %v771, 0.0
      %775 = vadd.xlane.f32.xlu0 %v774
      %v776 = vpop.xlane.xlu0 %775
      %v777 = vadd.f32 %v773, %v776
      %vm778 = vcmask 31768
      %779 = vst.msk [vmem:[#allocation3] sm:$0xff] %vm778, %v777
      %s780 = scalar_lea.vmem [#allocation4], 24
      %v781 = vld [vmem:[%s780] sm:$0xff]
      %783 = vset.pattern.permute.xlu0 3
      %784 = vperm.xlu0 %783, %v763
      %v785 = vpop.permute.xlu0 %784
      %v787 = vmul.f32 %v785, %v781
      %v788 = vpack.c.bf16 %v771, %v771
      %v790 = vunpack.c.l.b16 %v699
      %v791 = vpack.c.b16 %v790, %v790
      %792 = vrot.lane.b32.xlu0 %v791, 104
      %v793 = vpop.permute.xlu0 %792
      %v795 = vsel %vm276, %v788, 0
      %v798 = vsel %vm358, %v793, 0
      %800 = vmatprep.subr.bf16.mxu0 0
      %801 = vmatpush1.bf16.msra.mxu0 0
      %802 = vmatprep.subr.bf16.mxu0 0
      %803 = vmatpush1.bf16.msra.mxu0 0
      %804 = vmatprep.subr.bf16.mxu0 0
      %805 = vmatpush1.bf16.msra.mxu0 0
      %806 = vmatprep.subr.bf16.mxu0 0
      %807 = vmatpush1.bf16.msra.mxu0 0
      %808 = vmatprep.subr.bf16.mxu0 0
      %809 = vmatpush1.bf16.msra.mxu0 0
      %810 = vmatprep.subr.bf16.mxu0 0
      %811 = vmatpush1.bf16.msra.mxu0 0
      %812 = vmatprep.subr.bf16.mxu0 0
      %813 = vmatpush1.bf16.msra.mxu0 0
      %814 = vmatprep.subr.bf16.mxu0 0
      %815 = vmatpush1.bf16.msra.mxu0 %v798
      %816 = vmatprep.subr.bf16.mxu0 0
      %817 = vmatpush2.bf16.msra.mxu0 0
      %818 = vmatprep.subr.bf16.mxu0 0
      %819 = vmatpush2.bf16.msra.mxu0 0
      %820 = vmatprep.subr.bf16.mxu0 0
      %821 = vmatpush2.bf16.msra.mxu0 0
      %822 = vmatprep.subr.bf16.mxu0 0
      %823 = vmatpush2.bf16.msra.mxu0 0
      %824 = vmatprep.subr.bf16.mxu0 0
      %825 = vmatpush2.bf16.msra.mxu0 0
      %826 = vmatprep.subr.bf16.mxu0 0
      %827 = vmatpush2.bf16.msra.mxu0 0
      %828 = vmatprep.subr.bf16.mxu0 0
      %829 = vmatpush2.bf16.msra.mxu0 0
      %830 = vmatprep.subr.bf16.mxu0 0
      %831 = vmatpush2.bf16.msra.mxu0 0
      %832 = vmatprep.mubr.bf16.mxu0 0
      %833 = vmatmul.mubr.bf16.gmra.mxu0 %v795
      %v834 = vpop.f32.mrf.mxu0
      %v835 = vadd.f32 0.0, %v834
      %v836 = vpop.f32.mrf.mxu0
      %v837 = vpop.f32.mrf.mxu0
      %v838 = vpop.f32.mrf.mxu0
      %839 = vdwg.mxu0
      %v840 = vadd.f32 %v787, %v835
      %841 = vst.msk [vmem:[%s780] sm:$0xff] %vm276, %v840
      %842 = vst.msk [vmem:[#allocation2] sm:$0xff] %vm778, %v760
      // Predicated region
      $region37: #{dot_product_attention.4} parent=31 // pred_check
        %p843 = pneg %p261
      $region38: #{dot_product_attention.4} parent=31 // pred_check_branch
        %845 = sbr.rel (%p843) target = $region40
      $region39: #{dot_product_attention.4} parent=31 // pred_region
        %v846 = vld [vmem:[#allocation3] sm:$0xff]
        %v847 = vrcp.pop %v846
        %v848 = vld [vmem:[#allocation4] sm:$0xff]
        %850 = vset.pattern.permute.xlu0 0
        %851 = vperm.xlu0 %850, %v847
        %v852 = vpop.permute.xlu0 %851
        %v854 = vmul.f32 %v848, %v852
        %v855 = vpack.c.bf16 %v854, %v854
        %vm856 = vcmask 60416
        %857 = vst.msk [vmem:[%s259] sm:$0xf] %vm856, %v855
        %v858 = vld [vmem:[#allocation3] sm:$0xff]
        %v859 = vrcp.pop %v858
        %v860 = vld [vmem:[%s488] sm:$0xff]
        %862 = vset.pattern.permute.xlu0 1
        %863 = vperm.xlu0 %862, %v859
        %v864 = vpop.permute.xlu0 %863
        %v866 = vmul.f32 %v860, %v864
        %v867 = vpack.c.bf16 %v866, %v866
        %v869 = vunpack.c.l.b16 %v867
        %v870 = vpack.c.b16 %v869, %v869
        %871 = vrot.lane.b32.xlu0 %v870, 8
        %v872 = vpop.permute.xlu0 %871
        %vm874 = vcmask 126016
        %875 = vst.msk [vmem:[%s259] sm:$0xf] %vm874, %v872
        %v876 = vld [vmem:[#allocation3] sm:$0xff]
        %v877 = vrcp.pop %v876
        %v878 = vld [vmem:[%s634] sm:$0xff]
        %880 = vset.pattern.permute.xlu0 2
        %881 = vperm.xlu0 %880, %v877
        %v882 = vpop.permute.xlu0 %881
        %v884 = vmul.f32 %v878, %v882
        %v885 = vpack.c.bf16 %v884, %v884
        %v887 = vunpack.c.l.b16 %v885
        %v888 = vpack.c.b16 %v887, %v887
        %889 = vrot.lane.b32.xlu0 %v888, 16
        %v890 = vpop.permute.xlu0 %889
        %vm892 = vcmask 191616
        %893 = vst.msk [vmem:[%s259] sm:$0xf] %vm892, %v890
        %v894 = vld [vmem:[#allocation3] sm:$0xff]
        %v895 = vrcp.pop %v894
        %v896 = vld [vmem:[%s780] sm:$0xff]
        %898 = vset.pattern.permute.xlu0 3
        %899 = vperm.xlu0 %898, %v895
        %v900 = vpop.permute.xlu0 %899
        %v902 = vmul.f32 %v896, %v900
        %v903 = vpack.c.bf16 %v902, %v902
        %v905 = vunpack.c.l.b16 %v903
        %v906 = vpack.c.b16 %v905, %v905
        %907 = vrot.lane.b32.xlu0 %v906, 24
        %v908 = vpop.permute.xlu0 %907
        %vm910 = vcmask 257216
        %911 = vst.msk [vmem:[%s259] sm:$0xf] %vm910, %v908
      $region40: #{dot_product_attention.4} parent=31 // pred_fallthru
        _
      %p912 = scmp.lt.s32.totalorder %s19, 1
      %s913 = scalar_select %p912, %s19, 1
      %p914 = scmp.lt.s32.totalorder %s20, 0
      %s915 = scalar_select %p914, %s20, 0
      %s916 = sadd.s32 %s915, %s913
      %s917 = smul.addr %s916, 4
      %s918 = scalar_lea.vmem %s3, %s917
      // Predicated region
      $region41: #{dot_product_attention.4} parent=31 // pred_check
        %p919 = pneg %p137
      $region42: #{dot_product_attention.4} parent=31 // pred_check_branch
        %921 = sbr.rel (%p919) target = $region44
      $region43: #{dot_product_attention.4} parent=31 // pred_region
        _
      $region44: #{dot_product_attention.4} parent=31 // pred_fallthru
        _
    $region32: #{dot_product_attention.4} parent=5 // pred_fallthru
      _
    %p922 = scmp.le.s32.totalorder 2, %s9
    // Predicated region
    $region45: #{dot_product_attention.4} parent=5 // pred_check
      %p923 = pneg %p922
    $region46: #{dot_product_attention.4} parent=5 // pred_check_branch
      %925 = sbr.rel (%p923) target = $region48
    $region47: #{dot_product_attention.4} parent=5 // pred_region
      %s926 = ssub.s32 %s9, 2
      // Predicated region
      $region49: #{dot_product_attention.4} parent=47 // pred_check
        %p927 = pneg %p143
      $region50: #{dot_product_attention.4} parent=47 // pred_check_branch
        %929 = sbr.rel (%p927) target = $region52
      $region51: #{dot_product_attention.4} parent=47 // pred_region
        %p930 = scmp.lt.s32.totalorder %s22, 1
        %s931 = scalar_select %p930, %s22, 1
        %p932 = scmp.lt.s32.totalorder %s23, 0
        %s933 = scalar_select %p932, %s23, 0
        %s934 = sadd.s32 %s933, %s931
        %s935 = smul.addr %s934, 4
        %s936 = scalar_lea.vmem %s3, %s935
      $region52: #{dot_product_attention.4} parent=47 // pred_fallthru
        _
    $region48: #{dot_product_attention.4} parent=5 // pred_fallthru
      _
  $region6: #{dot_product_attention.4} parent=0 // loop_footer
    %s13 = sadd.s32 1, %s9
  $region7: #{dot_product_attention.4} parent=0 // loop_footer_branch
    %8 = sbr.rel target = $region3
  $region8: #{dot_product_attention.4} parent=0 // loop_exit
    _

</llo_original>
